<compile_context>
chip_gen: v7x
topology: tpu7x:2x2x1
jax: 0.10.0
libtpu: 0.0.40
codegen_flags: <defaults>
</compile_context>

<pallas_src>
import jax
import jax.numpy as jnp
import numpy as np
from jax.experimental import pallas as pl
from jax.experimental.pallas import tpu as pltpu

# ----------------------------- configuration -------------------------------
B = 2
IN_CH = 4
SEQ_LEN = 24
CV_K = (3, 3, 3, 3)   # cv1_k..cv4_k
CV_S = (1, 1, 1, 1)   # cv1_s..cv4_s
P_K = (2, 2, 2, 2)    # p1_k..p4_k
P_S = (1, 1, 1, 1)    # p1_s..p4_s
CH = (IN_CH, 3 * 2, 5 * 2, 8 * 2, 10 * 2)   # 4 -> 6 -> 10 -> 16 -> 20
MB_OUT = 8            # minibatch_layer
MB_HID = 16           # hidden_features
HIDDEN = 50


def _cp_lens():
    L = SEQ_LEN
    lens = []
    for i in range(4):
        L = (L - CV_K[i]) // CV_S[i] + 1       # conv (valid, stride 1)
        L = (L - P_K[i]) // P_S[i] + 1         # maxpool (valid, stride 1)
        lens.append(L)
    return lens


CP = _cp_lens()            # [21, 18, 15, 12]
CP4 = CP[-1]               # 12
CH4 = CH[-1]               # 20
FLAT = CH4 * CP4           # 240
MB_COLS = MB_OUT * MB_HID  # 128
NOUT = MB_COLS + HIDDEN    # 178

# ----------------------------- padded layout --------------------------------
SEG = SEQ_LEN              # per-sample lane segment (24); batch folded into lanes
WIDE = B * SEG             # 48
CPAD = (16, 16, 16, 16, 24)  # padded channel counts: input, layer1..4 outputs
FLAT_PAD = 256             # 240 -> 256 (lane-dense)
NOUT_PAD = 256             # cols [0:128]=feat@T, [128:178]=feat@W5a, rest 0
HPAD = 128                  # padded MLP hidden width

# conv slab row offsets: tap-stacked weights then biases
_CW_ROWS, _CB_ROWS = [], []
_r = 0
for _i in range(4):
    _CW_ROWS.append((_r, _r + CV_K[_i] * CPAD[_i + 1]))
    _r += CV_K[_i] * CPAD[_i + 1]
for _i in range(4):
    _CB_ROWS.append((_r, _r + CPAD[_i + 1]))
    _r += CPAD[_i + 1]
CW_ROWS_TOTAL = _r          # 288 (multiple of 8)

# head slab: [0:128)=group-sum g, [128:256)=w5m, [256:384)=w6, [384:512)=w7,
#            [512:520)=bias block (row0=b5, row1=b6, row2=b7)
HEAD_ROWS = 4 * HPAD + 8    # 520


# ------------------------------ fused kernel --------------------------------
def disc_kernel(x_ref, cw_ref, wc_ref, head_ref, o_ref, feat_scr):
    # x_ref: (16, 48) = padded channels x (B samples concatenated along lanes)

    def conv_relu_pool(h, w, bias, cout_pad, K, pk):
        # h: (cin_pad, W); w: (K*cout_pad, cin_pad) tap-stacked; bias: (cout_pad, 1)
        Wlen = h.shape[1]
        # ONE MXU push for all K taps and both batch samples.
        r = jnp.dot(w, h, preferred_element_type=jnp.float32)   # (K*cout_pad, W)
        wc_len = Wlen - (K - 1)
        acc = r[0:cout_pad, 0:wc_len]
        for k in range(1, K):                                    # tap combine (VPU)
            acc = acc + r[k * cout_pad:(k + 1) * cout_pad, k:k + wc_len]
        acc = jnp.maximum(acc + bias, 0.0)                       # bias + ReLU
        wp_len = wc_len - (pk - 1)                               # maxpool, stride 1
        p = acc[:, 0:wp_len]
        for j in range(1, pk):
            p = jnp.maximum(p, acc[:, j:j + wp_len])
        return p
        # NOTE: seam columns between the two lane segments become garbage but
        # are never read: each sample's valid window shrinks faster than the
        # segment (24-lane) pitch, so valid reads never cross samples.

    h = x_ref[...]                                               # (16, 48)
    for i in range(4):
        w = cw_ref[_CW_ROWS[i][0]:_CW_ROWS[i][1], :]
        bias = cw_ref[_CB_ROWS[i][0]:_CB_ROWS[i][1], 0:1]
        h = conv_relu_pool(h, w, bias, CPAD[i + 1], CV_K[i], P_K[i])
    # h: (24, 36); sample b valid block = rows [0:20], lanes [b*SEG, b*SEG+CP4)

    # torch flatten is channel-major: feat[c*CP4 + l] = h[c, l].  Assemble the
    # (B, 256) feature rows with plain masked row stores (no MXU involved).
    feat_scr[...] = jnp.zeros_like(feat_scr)
    for b in range(B):
        base = b * SEG
        for c in range(CH4):
            feat_scr[b:b + 1, c * CP4:(c + 1) * CP4] = h[c:c + 1, base:base + CP4]

    # ONE fused feature matmul: acc = feat @ [T_flat | W5a | 0]   -> (B, 256)
    acc = jnp.dot(feat_scr[...], wc_ref[...], preferred_element_type=jnp.float32)

    # ---- minibatch discrimination, exploiting B == 2 ------------------------
    # out[b, j] = sum_a exp(-sum_h |M[b,j,h]-M[a,j,h]|) - 1 == exp(-d01[j])
    diff = jnp.abs(acc[0:1, 0:MB_COLS] - acc[1:2, 0:MB_COLS])            # (1,128)
    d = jnp.dot(diff, head_ref[0:HPAD, :], preferred_element_type=jnp.float32)
    e = jnp.exp(-d)                           # (1,128); cols >= MB_OUT are exp(0)=1
    # w5m rows >= MB_OUT are zero, so the padded 1s contribute nothing.
    mb_term = jnp.dot(e, head_ref[HPAD:2 * HPAD, :],
                      preferred_element_type=jnp.float32)                # (1,128)

    bias_blk = head_ref[4 * HPAD:4 * HPAD + 8, :]                        # (8,128)
    b5 = bias_blk[0:1, :]
    b6 = bias_blk[1:2, :]
    b7 = bias_blk[2:3, :]

    # ---- layer5: Linear(FLAT+MB, 50) -> Linear(50, 50) -> Linear(50, 2) -----
    h5 = acc[:, MB_COLS:NOUT_PAD] + mb_term + b5                         # (B,128)
    h6 = jnp.dot(h5, head_ref[2 * HPAD:3 * HPAD, :],
                 preferred_element_type=jnp.float32) + b6                # (B,128)
    h7 = jnp.dot(h6, head_ref[3 * HPAD:4 * HPAD, :],
                 preferred_element_type=jnp.float32) + b7                # (B,128)
    logits = h7[:, 0:2]                                                  # (B,2)
    ez = jnp.exp(-jnp.abs(logits))                                       # stable sigmoid
    o_ref[...] = jnp.where(logits >= 0.0, 1.0 / (1.0 + ez), ez / (1.0 + ez))


def discriminator_forward(x_nchw, packed):
    # NCHW (B, C, L, 1) -> padded channels-first, batch folded into lanes.
    x_ncl = x_nchw[..., 0]                                           # (B, C, L)
    x_cbl = jnp.transpose(x_ncl, (1, 0, 2)).reshape(IN_CH, WIDE)     # (C, B*L)
    x_in = jnp.pad(x_cbl, ((0, CPAD[0] - IN_CH), (0, 0)))            # (16, 48)
    vmem = lambda: pl.BlockSpec(memory_space=pltpu.MemorySpace.VMEM)
    return pl.pallas_call(
        disc_kernel,
        out_shape=jax.ShapeDtypeStruct((B, 2), jnp.float32),
        in_specs=[vmem(), vmem(), vmem(), vmem()],
        out_specs=vmem(),
        scratch_shapes=[pltpu.VMEM((B, FLAT_PAD), jnp.float32)],
    )(x_in, packed["cw"], packed["wc"], packed["head"])


# --------------------------- host-side param packing ------------------------
def pack_params(conv, T_torch, head_params):
    w5a, w5m, b5, w6, b6, w7, b7 = head_params

    # conv slab: tap-stacked, channel-padded weights + biases, one array.
    cw = np.zeros((CW_ROWS_TOTAL, CPAD[0]), np.float32)
    for i in range(4):
        w = np.asarray(conv[2 * i])          # (K, Cout, Cin)
        b = np.asarray(conv[2 * i + 1])      # (Cout, 1)
        K, cout, cin = w.shape
        r0 = _CW_ROWS[i][0]
        for k in range(K):
            cw[r0 + k * CPAD[i + 1]: r0 + k * CPAD[i + 1] + cout, 0:cin] = w[k]
        rb = _CB_ROWS[i][0]
        cw[rb:rb + cout, 0:1] = b

    # fused feature weight [T_flat | W5a], zero-padded to (256, 256).
    wc = np.zeros((FLAT_PAD, NOUT_PAD), np.float32)
    wc[0:FLAT, 0:MB_COLS] = np.asarray(T_torch).reshape(FLAT, MB_COLS)
    wc[0:FLAT, MB_COLS:MB_COLS + HIDDEN] = np.asarray(w5a)

    # head slab: group-sum matrix, w5m, w6, w7 (all padded to 128 lanes) + biases.
    hs = np.zeros((HEAD_ROWS, HPAD), np.float32)
    for j in range(MB_OUT):                      # group-sum: col j sums group j
        hs[j * MB_HID:(j + 1) * MB_HID, j] = 1.0
    hs[HPAD:HPAD + MB_OUT, 0:HIDDEN] = np.asarray(w5m)
    hs[2 * HPAD:2 * HPAD + HIDDEN, 0:HIDDEN] = np.asarray(w6)
    hs[3 * HPAD:3 * HPAD + HIDDEN, 0:2] = np.asarray(w7)
    hs[4 * HPAD + 0, 0:HIDDEN] = np.asarray(b5).reshape(-1)
    hs[4 * HPAD + 1, 0:HIDDEN] = np.asarray(b6).reshape(-1)
    hs[4 * HPAD + 2, 0:2] = np.asarray(b7).reshape(-1)

    return dict(cw=jnp.asarray(cw), wc=jnp.asarray(wc), head=jnp.asarray(hs))


# ------------------------- pure-JAX reference (check) -----------------------
def reference_forward(x_nchw, params):
    h = x_nchw
    for i in range(4):
        w, b = params["conv"][2 * i], params["conv"][2 * i + 1]
        # kernel layout (K, Cout, Cin) -> torch OIHW (Cout, Cin, K, 1)
        w_oihw = jnp.transpose(w, (1, 2, 0))[..., None]
        h = jax.lax.conv_general_dilated(
            h, w_oihw, window_strides=(CV_S[i], 1), padding="VALID",
            dimension_numbers=("NCHW", "OIHW", "NCHW"))
        h = jnp.maximum(h + b[:, 0][None, :, None, None], 0.0)
        h = jax.lax.reduce_window(h, -jnp.inf, jax.lax.max,
                                  (1, 1, P_K[i], 1), (1, 1, P_S[i], 1), "VALID")
    feat = h.reshape(B, -1)
    T = params["T_torch"]                                  # (FLAT, MB_OUT, MB_HID)
    M = (feat @ T.reshape(FLAT, -1)).reshape(B, MB_OUT, MB_HID)
    dist = jnp.abs(M[None, :, :, :] - M[:, None, :, :]).sum(-1)   # (B, B, MB)
    out = jnp.exp(-dist).sum(0) - 1.0                              # (B, MB)
    xcat = jnp.concatenate([feat, out], axis=1)
    w5a, w5m, b5, w6, b6, w7, b7 = params["head"]
    W5 = jnp.concatenate([w5a, w5m], axis=0)
    hh = xcat @ W5 + b5
    hh = hh @ w6 + b6
    hh = hh @ w7 + b7
    return jax.nn.sigmoid(hh)


# ----------------------------------- main ------------------------------------
if __name__ == "__main__":
    key = jax.random.PRNGKey(0)
    ks = jax.random.split(key, 20)

    x = jax.random.normal(ks[0], (B, IN_CH, SEQ_LEN, 1), jnp.float32)

    # conv parameters: w_i (K, Cout, Cin), b_i (Cout, 1)
    conv = []
    for i in range(4):
        fan_in = CV_K[i] * CH[i]
        w = jax.random.normal(ks[1 + 2 * i], (CV_K[i], CH[i + 1], CH[i]),
                              jnp.float32) / np.sqrt(fan_in)
        b = 0.1 * jax.random.normal(ks[2 + 2 * i], (CH[i + 1], 1), jnp.float32)
        conv += [w, b]

    # MinibatchDiscrimination tensor T ~ N(0, 1), torch layout (FLAT, MB_OUT, MB_HID)
    T_torch = jax.random.normal(ks[9], (FLAT, MB_OUT, MB_HID), jnp.float32)

    # layer5 linear weights (stored transposed: (in, out)), biases as (1, out)
    w5 = jax.random.normal(ks[10], (FLAT + MB_OUT, HIDDEN),
                           jnp.float32) / np.sqrt(FLAT + MB_OUT)
    b5 = 0.1 * jax.random.normal(ks[11], (1, HIDDEN), jnp.float32)
    w6 = jax.random.normal(ks[12], (HIDDEN, HIDDEN), jnp.float32) / np.sqrt(HIDDEN)
    b6 = 0.1 * jax.random.normal(ks[13], (1, HIDDEN), jnp.float32)
    w7 = jax.random.normal(ks[14], (HIDDEN, 2), jnp.float32) / np.sqrt(HIDDEN)
    b7 = 0.1 * jax.random.normal(ks[15], (1, 2), jnp.float32)
    w5a, w5m = w5[:FLAT], w5[FLAT:]
    head_params = (w5a, w5m, b5, w6, b6, w7, b7)

    packed = pack_params(conv, T_torch, head_params)
    params = dict(conv=conv, T_torch=T_torch, head=head_params)

    out = discriminator_forward(x, packed)
    out = jax.block_until_ready(out)
    assert out.shape == (B, 2), out.shape

    ref = reference_forward(x, params)
    assert jnp.allclose(out, ref, rtol=1e-3, atol=1e-3), (out, ref)

    print("KERNEL_OK")
</pallas_src>

<mosaic_0001>
module attributes {stable_mosaic.version = 11 : i64} {
  func.func @disc_kernel(%arg0: memref<16x48xf32, #tpu.memory_space<vmem>>, %arg1: memref<288x16xf32, #tpu.memory_space<vmem>>, %arg2: memref<256x256xf32, #tpu.memory_space<vmem>>, %arg3: memref<520x128xf32, #tpu.memory_space<vmem>>, %arg4: memref<2x2xf32, #tpu.memory_space<vmem>>, %arg5: memref<2x256xf32, #tpu.memory_space<vmem>>) attributes {dimension_semantics = [], scalar_prefetch = 0 : i64, scratch_operands = 1 : i64, tpu.core_type = #tpu.core_type<tc>} {
    %c0 = arith.constant 0 : index
    %c0_0 = arith.constant 0 : index
    %0 = vector.load %arg0[%c0, %c0_0] : memref<16x48xf32, #tpu.memory_space<vmem>>, vector<16x48xf32>
    %c0_1 = arith.constant 0 : index
    %c0_2 = arith.constant 0 : index
    %1 = vector.load %arg1[%c0_1, %c0_2] : memref<288x16xf32, #tpu.memory_space<vmem>>, vector<48x16xf32>
    %c216 = arith.constant 216 : index
    %c0_3 = arith.constant 0 : index
    %2 = vector.load %arg1[%c216, %c0_3] : memref<288x16xf32, #tpu.memory_space<vmem>>, vector<16x1xf32>
    %cst = arith.constant dense<0.000000e+00> : vector<48x48xf32>
    %3 = tpu.matmul %1, %0, %cst {dimension_numbers = #tpu.dot_dimension_numbers<[1], [0], [0], [1], [0, 0, 1, 1], [], []>} : vector<48x16xf32>, vector<16x48xf32>, vector<48x48xf32> -> vector<48x48xf32>
    %4 = vector.extract_strided_slice %3 {offsets = [0, 0], sizes = [16, 46], strides = [1, 1]} : vector<48x48xf32> to vector<16x46xf32>
    %5 = vector.extract_strided_slice %3 {offsets = [16, 1], sizes = [16, 46], strides = [1, 1]} : vector<48x48xf32> to vector<16x46xf32>
    %6 = arith.addf %4, %5 : vector<16x46xf32>
    %7 = vector.extract_strided_slice %3 {offsets = [32, 2], sizes = [16, 46], strides = [1, 1]} : vector<48x48xf32> to vector<16x46xf32>
    %8 = arith.addf %6, %7 : vector<16x46xf32>
    %9 = vector.broadcast %2 : vector<16x1xf32> to vector<16x46xf32>
    %10 = arith.addf %8, %9 : vector<16x46xf32>
    %cst_4 = arith.constant 0.000000e+00 : f32
    %11 = vector.broadcast %cst_4 : f32 to vector<16x46xf32>
    %12 = arith.maximumf %10, %11 : vector<16x46xf32>
    %13 = vector.extract_strided_slice %12 {offsets = [0, 0], sizes = [16, 45], strides = [1, 1]} : vector<16x46xf32> to vector<16x45xf32>
    %14 = vector.extract_strided_slice %12 {offsets = [0, 1], sizes = [16, 45], strides = [1, 1]} : vector<16x46xf32> to vector<16x45xf32>
    %15 = arith.maximumf %13, %14 : vector<16x45xf32>
    %c48 = arith.constant 48 : index
    %c0_5 = arith.constant 0 : index
    %16 = vector.load %arg1[%c48, %c0_5] : memref<288x16xf32, #tpu.memory_space<vmem>>, vector<48x16xf32>
    %c232 = arith.constant 232 : index
    %c0_6 = arith.constant 0 : index
    %17 = vector.load %arg1[%c232, %c0_6] : memref<288x16xf32, #tpu.memory_space<vmem>>, vector<16x1xf32>
    %cst_7 = arith.constant dense<0.000000e+00> : vector<48x45xf32>
    %18 = tpu.matmul %16, %15, %cst_7 {dimension_numbers = #tpu.dot_dimension_numbers<[1], [0], [0], [1], [0, 0, 1, 1], [], []>} : vector<48x16xf32>, vector<16x45xf32>, vector<48x45xf32> -> vector<48x45xf32>
    %19 = vector.extract_strided_slice %18 {offsets = [0, 0], sizes = [16, 43], strides = [1, 1]} : vector<48x45xf32> to vector<16x43xf32>
    %20 = vector.extract_strided_slice %18 {offsets = [16, 1], sizes = [16, 43], strides = [1, 1]} : vector<48x45xf32> to vector<16x43xf32>
    %21 = arith.addf %19, %20 : vector<16x43xf32>
    %22 = vector.extract_strided_slice %18 {offsets = [32, 2], sizes = [16, 43], strides = [1, 1]} : vector<48x45xf32> to vector<16x43xf32>
    %23 = arith.addf %21, %22 : vector<16x43xf32>
    %24 = vector.broadcast %17 : vector<16x1xf32> to vector<16x43xf32>
    %25 = arith.addf %23, %24 : vector<16x43xf32>
    %cst_8 = arith.constant 0.000000e+00 : f32
    %26 = vector.broadcast %cst_8 : f32 to vector<16x43xf32>
    %27 = arith.maximumf %25, %26 : vector<16x43xf32>
    %28 = vector.extract_strided_slice %27 {offsets = [0, 0], sizes = [16, 42], strides = [1, 1]} : vector<16x43xf32> to vector<16x42xf32>
    %29 = vector.extract_strided_slice %27 {offsets = [0, 1], sizes = [16, 42], strides = [1, 1]} : vector<16x43xf32> to vector<16x42xf32>
    %30 = arith.maximumf %28, %29 : vector<16x42xf32>
    %c96 = arith.constant 96 : index
    %c0_9 = arith.constant 0 : index
    %31 = vector.load %arg1[%c96, %c0_9] : memref<288x16xf32, #tpu.memory_space<vmem>>, vector<48x16xf32>
    %c248 = arith.constant 248 : index
    %c0_10 = arith.constant 0 : index
    %32 = vector.load %arg1[%c248, %c0_10] : memref<288x16xf32, #tpu.memory_space<vmem>>, vector<16x1xf32>
    %cst_11 = arith.constant dense<0.000000e+00> : vector<48x42xf32>
    %33 = tpu.matmul %31, %30, %cst_11 {dimension_numbers = #tpu.dot_dimension_numbers<[1], [0], [0], [1], [0, 0, 1, 1], [], []>} : vector<48x16xf32>, vector<16x42xf32>, vector<48x42xf32> -> vector<48x42xf32>
    %34 = vector.extract_strided_slice %33 {offsets = [0, 0], sizes = [16, 40], strides = [1, 1]} : vector<48x42xf32> to vector<16x40xf32>
    %35 = vector.extract_strided_slice %33 {offsets = [16, 1], sizes = [16, 40], strides = [1, 1]} : vector<48x42xf32> to vector<16x40xf32>
    %36 = arith.addf %34, %35 : vector<16x40xf32>
    %37 = vector.extract_strided_slice %33 {offsets = [32, 2], sizes = [16, 40], strides = [1, 1]} : vector<48x42xf32> to vector<16x40xf32>
    %38 = arith.addf %36, %37 : vector<16x40xf32>
    %39 = vector.broadcast %32 : vector<16x1xf32> to vector<16x40xf32>
    %40 = arith.addf %38, %39 : vector<16x40xf32>
    %cst_12 = arith.constant 0.000000e+00 : f32
    %41 = vector.broadcast %cst_12 : f32 to vector<16x40xf32>
    %42 = arith.maximumf %40, %41 : vector<16x40xf32>
    %43 = vector.extract_strided_slice %42 {offsets = [0, 0], sizes = [16, 39], strides = [1, 1]} : vector<16x40xf32> to vector<16x39xf32>
    %44 = vector.extract_strided_slice %42 {offsets = [0, 1], sizes = [16, 39], strides = [1, 1]} : vector<16x40xf32> to vector<16x39xf32>
    %45 = arith.maximumf %43, %44 : vector<16x39xf32>
    %c144 = arith.constant 144 : index
    %c0_13 = arith.constant 0 : index
    %46 = vector.load %arg1[%c144, %c0_13] : memref<288x16xf32, #tpu.memory_space<vmem>>, vector<72x16xf32>
    %c264 = arith.constant 264 : index
    %c0_14 = arith.constant 0 : index
    %47 = vector.load %arg1[%c264, %c0_14] : memref<288x16xf32, #tpu.memory_space<vmem>>, vector<24x1xf32>
    %cst_15 = arith.constant dense<0.000000e+00> : vector<72x39xf32>
    %48 = tpu.matmul %46, %45, %cst_15 {dimension_numbers = #tpu.dot_dimension_numbers<[1], [0], [0], [1], [0, 0, 1, 1], [], []>} : vector<72x16xf32>, vector<16x39xf32>, vector<72x39xf32> -> vector<72x39xf32>
    %49 = vector.extract_strided_slice %48 {offsets = [0, 0], sizes = [24, 37], strides = [1, 1]} : vector<72x39xf32> to vector<24x37xf32>
    %50 = vector.extract_strided_slice %48 {offsets = [24, 1], sizes = [24, 37], strides = [1, 1]} : vector<72x39xf32> to vector<24x37xf32>
    %51 = arith.addf %49, %50 : vector<24x37xf32>
    %52 = vector.extract_strided_slice %48 {offsets = [48, 2], sizes = [24, 37], strides = [1, 1]} : vector<72x39xf32> to vector<24x37xf32>
    %53 = arith.addf %51, %52 : vector<24x37xf32>
    %54 = vector.broadcast %47 : vector<24x1xf32> to vector<24x37xf32>
    %55 = arith.addf %53, %54 : vector<24x37xf32>
    %cst_16 = arith.constant 0.000000e+00 : f32
    %56 = vector.broadcast %cst_16 : f32 to vector<24x37xf32>
    %57 = arith.maximumf %55, %56 : vector<24x37xf32>
    %58 = vector.extract_strided_slice %57 {offsets = [0, 0], sizes = [24, 36], strides = [1, 1]} : vector<24x37xf32> to vector<24x36xf32>
    %59 = vector.extract_strided_slice %57 {offsets = [0, 1], sizes = [24, 36], strides = [1, 1]} : vector<24x37xf32> to vector<24x36xf32>
    %60 = arith.maximumf %58, %59 : vector<24x36xf32>
    %cst_17 = arith.constant 0.000000e+00 : f32
    %61 = vector.broadcast %cst_17 : f32 to vector<2x256xf32>
    %c0_18 = arith.constant 0 : index
    %c0_19 = arith.constant 0 : index
    %62 = vector.load %arg5[%c0_18, %c0_19] : memref<2x256xf32, #tpu.memory_space<vmem>>, vector<2x256xf32>
    tpu.vector_store %arg5[%c0_18, %c0_19], %61 {strides = array<i32>} : memref<2x256xf32, #tpu.memory_space<vmem>>, vector<2x256xf32>,
    %63 = vector.extract_strided_slice %60 {offsets = [0, 0], sizes = [1, 12], strides = [1, 1]} : vector<24x36xf32> to vector<1x12xf32>
    %c0_20 = arith.constant 0 : index
    %c0_21 = arith.constant 0 : index
    %64 = vector.load %arg5[%c0_20, %c0_21] : memref<2x256xf32, #tpu.memory_space<vmem>>, vector<1x12xf32>
    tpu.vector_store %arg5[%c0_20, %c0_21], %63 {strides = array<i32>} : memref<2x256xf32, #tpu.memory_space<vmem>>, vector<1x12xf32>,
    %65 = vector.extract_strided_slice %60 {offsets = [1, 0], sizes = [1, 12], strides = [1, 1]} : vector<24x36xf32> to vector<1x12xf32>
    %c0_22 = arith.constant 0 : index
    %c12 = arith.constant 12 : index
    %66 = vector.load %arg5[%c0_22, %c12] : memref<2x256xf32, #tpu.memory_space<vmem>>, vector<1x12xf32>
    tpu.vector_store %arg5[%c0_22, %c12], %65 {strides = array<i32>} : memref<2x256xf32, #tpu.memory_space<vmem>>, vector<1x12xf32>,
    %67 = vector.extract_strided_slice %60 {offsets = [2, 0], sizes = [1, 12], strides = [1, 1]} : vector<24x36xf32> to vector<1x12xf32>
    %c0_23 = arith.constant 0 : index
    %c24 = arith.constant 24 : index
    %68 = vector.load %arg5[%c0_23, %c24] : memref<2x256xf32, #tpu.memory_space<vmem>>, vector<1x12xf32>
    tpu.vector_store %arg5[%c0_23, %c24], %67 {strides = array<i32>} : memref<2x256xf32, #tpu.memory_space<vmem>>, vector<1x12xf32>,
    %69 = vector.extract_strided_slice %60 {offsets = [3, 0], sizes = [1, 12], strides = [1, 1]} : vector<24x36xf32> to vector<1x12xf32>
    %c0_24 = arith.constant 0 : index
    %c36 = arith.constant 36 : index
    %70 = vector.load %arg5[%c0_24, %c36] : memref<2x256xf32, #tpu.memory_space<vmem>>, vector<1x12xf32>
    tpu.vector_store %arg5[%c0_24, %c36], %69 {strides = array<i32>} : memref<2x256xf32, #tpu.memory_space<vmem>>, vector<1x12xf32>,
    %71 = vector.extract_strided_slice %60 {offsets = [4, 0], sizes = [1, 12], strides = [1, 1]} : vector<24x36xf32> to vector<1x12xf32>
    %c0_25 = arith.constant 0 : index
    %c48_26 = arith.constant 48 : index
    %72 = vector.load %arg5[%c0_25, %c48_26] : memref<2x256xf32, #tpu.memory_space<vmem>>, vector<1x12xf32>
    tpu.vector_store %arg5[%c0_25, %c48_26], %71 {strides = array<i32>} : memref<2x256xf32, #tpu.memory_space<vmem>>, vector<1x12xf32>,
    %73 = vector.extract_strided_slice %60 {offsets = [5, 0], sizes = [1, 12], strides = [1, 1]} : vector<24x36xf32> to vector<1x12xf32>
    %c0_27 = arith.constant 0 : index
    %c60 = arith.constant 60 : index
    %74 = vector.load %arg5[%c0_27, %c60] : memref<2x256xf32, #tpu.memory_space<vmem>>, vector<1x12xf32>
    tpu.vector_store %arg5[%c0_27, %c60], %73 {strides = array<i32>} : memref<2x256xf32, #tpu.memory_space<vmem>>, vector<1x12xf32>,
    %75 = vector.extract_strided_slice %60 {offsets = [6, 0], sizes = [1, 12], strides = [1, 1]} : vector<24x36xf32> to vector<1x12xf32>
    %c0_28 = arith.constant 0 : index
    %c72 = arith.constant 72 : index
    %76 = vector.load %arg5[%c0_28, %c72] : memref<2x256xf32, #tpu.memory_space<vmem>>, vector<1x12xf32>
    tpu.vector_store %arg5[%c0_28, %c72], %75 {strides = array<i32>} : memref<2x256xf32, #tpu.memory_space<vmem>>, vector<1x12xf32>,
    %77 = vector.extract_strided_slice %60 {offsets = [7, 0], sizes = [1, 12], strides = [1, 1]} : vector<24x36xf32> to vector<1x12xf32>
    %c0_29 = arith.constant 0 : index
    %c84 = arith.constant 84 : index
    %78 = vector.load %arg5[%c0_29, %c84] : memref<2x256xf32, #tpu.memory_space<vmem>>, vector<1x12xf32>
    tpu.vector_store %arg5[%c0_29, %c84], %77 {strides = array<i32>} : memref<2x256xf32, #tpu.memory_space<vmem>>, vector<1x12xf32>,
    %79 = vector.extract_strided_slice %60 {offsets = [8, 0], sizes = [1, 12], strides = [1, 1]} : vector<24x36xf32> to vector<1x12xf32>
    %c0_30 = arith.constant 0 : index
    %c96_31 = arith.constant 96 : index
    %80 = vector.load %arg5[%c0_30, %c96_31] : memref<2x256xf32, #tpu.memory_space<vmem>>, vector<1x12xf32>
    tpu.vector_store %arg5[%c0_30, %c96_31], %79 {strides = array<i32>} : memref<2x256xf32, #tpu.memory_space<vmem>>, vector<1x12xf32>,
    %81 = vector.extract_strided_slice %60 {offsets = [9, 0], sizes = [1, 12], strides = [1, 1]} : vector<24x36xf32> to vector<1x12xf32>
    %c0_32 = arith.constant 0 : index
    %c108 = arith.constant 108 : index
    %82 = vector.load %arg5[%c0_32, %c108] : memref<2x256xf32, #tpu.memory_space<vmem>>, vector<1x12xf32>
    tpu.vector_store %arg5[%c0_32, %c108], %81 {strides = array<i32>} : memref<2x256xf32, #tpu.memory_space<vmem>>, vector<1x12xf32>,
    %83 = vector.extract_strided_slice %60 {offsets = [10, 0], sizes = [1, 12], strides = [1, 1]} : vector<24x36xf32> to vector<1x12xf32>
    %c0_33 = arith.constant 0 : index
    %c120 = arith.constant 120 : index
    %84 = vector.load %arg5[%c0_33, %c120] : memref<2x256xf32, #tpu.memory_space<vmem>>, vector<1x12xf32>
    tpu.vector_store %arg5[%c0_33, %c120], %83 {strides = array<i32>} : memref<2x256xf32, #tpu.memory_space<vmem>>, vector<1x12xf32>,
    %85 = vector.extract_strided_slice %60 {offsets = [11, 0], sizes = [1, 12], strides = [1, 1]} : vector<24x36xf32> to vector<1x12xf32>
    %c0_34 = arith.constant 0 : index
    %c132 = arith.constant 132 : index
    %86 = vector.load %arg5[%c0_34, %c132] : memref<2x256xf32, #tpu.memory_space<vmem>>, vector<1x12xf32>
    tpu.vector_store %arg5[%c0_34, %c132], %85 {strides = array<i32>} : memref<2x256xf32, #tpu.memory_space<vmem>>, vector<1x12xf32>,
    %87 = vector.extract_strided_slice %60 {offsets = [12, 0], sizes = [1, 12], strides = [1, 1]} : vector<24x36xf32> to vector<1x12xf32>
    %c0_35 = arith.constant 0 : index
    %c144_36 = arith.constant 144 : index
    %88 = vector.load %arg5[%c0_35, %c144_36] : memref<2x256xf32, #tpu.memory_space<vmem>>, vector<1x12xf32>
    tpu.vector_store %arg5[%c0_35, %c144_36], %87 {strides = array<i32>} : memref<2x256xf32, #tpu.memory_space<vmem>>, vector<1x12xf32>,
    %89 = vector.extract_strided_slice %60 {offsets = [13, 0], sizes = [1, 12], strides = [1, 1]} : vector<24x36xf32> to vector<1x12xf32>
    %c0_37 = arith.constant 0 : index
    %c156 = arith.constant 156 : index
    %90 = vector.load %arg5[%c0_37, %c156] : memref<2x256xf32, #tpu.memory_space<vmem>>, vector<1x12xf32>
    tpu.vector_store %arg5[%c0_37, %c156], %89 {strides = array<i32>} : memref<2x256xf32, #tpu.memory_space<vmem>>, vector<1x12xf32>,
    %91 = vector.extract_strided_slice %60 {offsets = [14, 0], sizes = [1, 12], strides = [1, 1]} : vector<24x36xf32> to vector<1x12xf32>
    %c0_38 = arith.constant 0 : index
    %c168 = arith.constant 168 : index
    %92 = vector.load %arg5[%c0_38, %c168] : memref<2x256xf32, #tpu.memory_space<vmem>>, vector<1x12xf32>
    tpu.vector_store %arg5[%c0_38, %c168], %91 {strides = array<i32>} : memref<2x256xf32, #tpu.memory_space<vmem>>, vector<1x12xf32>,
    %93 = vector.extract_strided_slice %60 {offsets = [15, 0], sizes = [1, 12], strides = [1, 1]} : vector<24x36xf32> to vector<1x12xf32>
    %c0_39 = arith.constant 0 : index
    %c180 = arith.constant 180 : index
    %94 = vector.load %arg5[%c0_39, %c180] : memref<2x256xf32, #tpu.memory_space<vmem>>, vector<1x12xf32>
    tpu.vector_store %arg5[%c0_39, %c180], %93 {strides = array<i32>} : memref<2x256xf32, #tpu.memory_space<vmem>>, vector<1x12xf32>,
    %95 = vector.extract_strided_slice %60 {offsets = [16, 0], sizes = [1, 12], strides = [1, 1]} : vector<24x36xf32> to vector<1x12xf32>
    %c0_40 = arith.constant 0 : index
    %c192 = arith.constant 192 : index
    %96 = vector.load %arg5[%c0_40, %c192] : memref<2x256xf32, #tpu.memory_space<vmem>>, vector<1x12xf32>
    tpu.vector_store %arg5[%c0_40, %c192], %95 {strides = array<i32>} : memref<2x256xf32, #tpu.memory_space<vmem>>, vector<1x12xf32>,
    %97 = vector.extract_strided_slice %60 {offsets = [17, 0], sizes = [1, 12], strides = [1, 1]} : vector<24x36xf32> to vector<1x12xf32>
    %c0_41 = arith.constant 0 : index
    %c204 = arith.constant 204 : index
    %98 = vector.load %arg5[%c0_41, %c204] : memref<2x256xf32, #tpu.memory_space<vmem>>, vector<1x12xf32>
    tpu.vector_store %arg5[%c0_41, %c204], %97 {strides = array<i32>} : memref<2x256xf32, #tpu.memory_space<vmem>>, vector<1x12xf32>,
    %99 = vector.extract_strided_slice %60 {offsets = [18, 0], sizes = [1, 12], strides = [1, 1]} : vector<24x36xf32> to vector<1x12xf32>
    %c0_42 = arith.constant 0 : index
    %c216_43 = arith.constant 216 : index
    %100 = vector.load %arg5[%c0_42, %c216_43] : memref<2x256xf32, #tpu.memory_space<vmem>>, vector<1x12xf32>
    tpu.vector_store %arg5[%c0_42, %c216_43], %99 {strides = array<i32>} : memref<2x256xf32, #tpu.memory_space<vmem>>, vector<1x12xf32>,
    %101 = vector.extract_strided_slice %60 {offsets = [19, 0], sizes = [1, 12], strides = [1, 1]} : vector<24x36xf32> to vector<1x12xf32>
    %c0_44 = arith.constant 0 : index
    %c228 = arith.constant 228 : index
    %102 = vector.load %arg5[%c0_44, %c228] : memref<2x256xf32, #tpu.memory_space<vmem>>, vector<1x12xf32>
    tpu.vector_store %arg5[%c0_44, %c228], %101 {strides = array<i32>} : memref<2x256xf32, #tpu.memory_space<vmem>>, vector<1x12xf32>,
    %103 = vector.extract_strided_slice %60 {offsets = [0, 24], sizes = [1, 12], strides = [1, 1]} : vector<24x36xf32> to vector<1x12xf32>
    %c1 = arith.constant 1 : index
    %c0_45 = arith.constant 0 : index
    %104 = vector.load %arg5[%c1, %c0_45] : memref<2x256xf32, #tpu.memory_space<vmem>>, vector<1x12xf32>
    tpu.vector_store %arg5[%c1, %c0_45], %103 {strides = array<i32>} : memref<2x256xf32, #tpu.memory_space<vmem>>, vector<1x12xf32>,
    %105 = vector.extract_strided_slice %60 {offsets = [1, 24], sizes = [1, 12], strides = [1, 1]} : vector<24x36xf32> to vector<1x12xf32>
    %c1_46 = arith.constant 1 : index
    %c12_47 = arith.constant 12 : index
    %106 = vector.load %arg5[%c1_46, %c12_47] : memref<2x256xf32, #tpu.memory_space<vmem>>, vector<1x12xf32>
    tpu.vector_store %arg5[%c1_46, %c12_47], %105 {strides = array<i32>} : memref<2x256xf32, #tpu.memory_space<vmem>>, vector<1x12xf32>,
    %107 = vector.extract_strided_slice %60 {offsets = [2, 24], sizes = [1, 12], strides = [1, 1]} : vector<24x36xf32> to vector<1x12xf32>
    %c1_48 = arith.constant 1 : index
    %c24_49 = arith.constant 24 : index
    %108 = vector.load %arg5[%c1_48, %c24_49] : memref<2x256xf32, #tpu.memory_space<vmem>>, vector<1x12xf32>
    tpu.vector_store %arg5[%c1_48, %c24_49], %107 {strides = array<i32>} : memref<2x256xf32, #tpu.memory_space<vmem>>, vector<1x12xf32>,
    %109 = vector.extract_strided_slice %60 {offsets = [3, 24], sizes = [1, 12], strides = [1, 1]} : vector<24x36xf32> to vector<1x12xf32>
    %c1_50 = arith.constant 1 : index
    %c36_51 = arith.constant 36 : index
    %110 = vector.load %arg5[%c1_50, %c36_51] : memref<2x256xf32, #tpu.memory_space<vmem>>, vector<1x12xf32>
    tpu.vector_store %arg5[%c1_50, %c36_51], %109 {strides = array<i32>} : memref<2x256xf32, #tpu.memory_space<vmem>>, vector<1x12xf32>,
    %111 = vector.extract_strided_slice %60 {offsets = [4, 24], sizes = [1, 12], strides = [1, 1]} : vector<24x36xf32> to vector<1x12xf32>
    %c1_52 = arith.constant 1 : index
    %c48_53 = arith.constant 48 : index
    %112 = vector.load %arg5[%c1_52, %c48_53] : memref<2x256xf32, #tpu.memory_space<vmem>>, vector<1x12xf32>
    tpu.vector_store %arg5[%c1_52, %c48_53], %111 {strides = array<i32>} : memref<2x256xf32, #tpu.memory_space<vmem>>, vector<1x12xf32>,
    %113 = vector.extract_strided_slice %60 {offsets = [5, 24], sizes = [1, 12], strides = [1, 1]} : vector<24x36xf32> to vector<1x12xf32>
    %c1_54 = arith.constant 1 : index
    %c60_55 = arith.constant 60 : index
    %114 = vector.load %arg5[%c1_54, %c60_55] : memref<2x256xf32, #tpu.memory_space<vmem>>, vector<1x12xf32>
    tpu.vector_store %arg5[%c1_54, %c60_55], %113 {strides = array<i32>} : memref<2x256xf32, #tpu.memory_space<vmem>>, vector<1x12xf32>,
    %115 = vector.extract_strided_slice %60 {offsets = [6, 24], sizes = [1, 12], strides = [1, 1]} : vector<24x36xf32> to vector<1x12xf32>
    %c1_56 = arith.constant 1 : index
    %c72_57 = arith.constant 72 : index
    %116 = vector.load %arg5[%c1_56, %c72_57] : memref<2x256xf32, #tpu.memory_space<vmem>>, vector<1x12xf32>
    tpu.vector_store %arg5[%c1_56, %c72_57], %115 {strides = array<i32>} : memref<2x256xf32, #tpu.memory_space<vmem>>, vector<1x12xf32>,
    %117 = vector.extract_strided_slice %60 {offsets = [7, 24], sizes = [1, 12], strides = [1, 1]} : vector<24x36xf32> to vector<1x12xf32>
    %c1_58 = arith.constant 1 : index
    %c84_59 = arith.constant 84 : index
    %118 = vector.load %arg5[%c1_58, %c84_59] : memref<2x256xf32, #tpu.memory_space<vmem>>, vector<1x12xf32>
    tpu.vector_store %arg5[%c1_58, %c84_59], %117 {strides = array<i32>} : memref<2x256xf32, #tpu.memory_space<vmem>>, vector<1x12xf32>,
    %119 = vector.extract_strided_slice %60 {offsets = [8, 24], sizes = [1, 12], strides = [1, 1]} : vector<24x36xf32> to vector<1x12xf32>
    %c1_60 = arith.constant 1 : index
    %c96_61 = arith.constant 96 : index
    %120 = vector.load %arg5[%c1_60, %c96_61] : memref<2x256xf32, #tpu.memory_space<vmem>>, vector<1x12xf32>
    tpu.vector_store %arg5[%c1_60, %c96_61], %119 {strides = array<i32>} : memref<2x256xf32, #tpu.memory_space<vmem>>, vector<1x12xf32>,
    %121 = vector.extract_strided_slice %60 {offsets = [9, 24], sizes = [1, 12], strides = [1, 1]} : vector<24x36xf32> to vector<1x12xf32>
    %c1_62 = arith.constant 1 : index
    %c108_63 = arith.constant 108 : index
    %122 = vector.load %arg5[%c1_62, %c108_63] : memref<2x256xf32, #tpu.memory_space<vmem>>, vector<1x12xf32>
    tpu.vector_store %arg5[%c1_62, %c108_63], %121 {strides = array<i32>} : memref<2x256xf32, #tpu.memory_space<vmem>>, vector<1x12xf32>,
    %123 = vector.extract_strided_slice %60 {offsets = [10, 24], sizes = [1, 12], strides = [1, 1]} : vector<24x36xf32> to vector<1x12xf32>
    %c1_64 = arith.constant 1 : index
    %c120_65 = arith.constant 120 : index
    %124 = vector.load %arg5[%c1_64, %c120_65] : memref<2x256xf32, #tpu.memory_space<vmem>>, vector<1x12xf32>
    tpu.vector_store %arg5[%c1_64, %c120_65], %123 {strides = array<i32>} : memref<2x256xf32, #tpu.memory_space<vmem>>, vector<1x12xf32>,
    %125 = vector.extract_strided_slice %60 {offsets = [11, 24], sizes = [1, 12], strides = [1, 1]} : vector<24x36xf32> to vector<1x12xf32>
    %c1_66 = arith.constant 1 : index
    %c132_67 = arith.constant 132 : index
    %126 = vector.load %arg5[%c1_66, %c132_67] : memref<2x256xf32, #tpu.memory_space<vmem>>, vector<1x12xf32>
    tpu.vector_store %arg5[%c1_66, %c132_67], %125 {strides = array<i32>} : memref<2x256xf32, #tpu.memory_space<vmem>>, vector<1x12xf32>,
    %127 = vector.extract_strided_slice %60 {offsets = [12, 24], sizes = [1, 12], strides = [1, 1]} : vector<24x36xf32> to vector<1x12xf32>
    %c1_68 = arith.constant 1 : index
    %c144_69 = arith.constant 144 : index
    %128 = vector.load %arg5[%c1_68, %c144_69] : memref<2x256xf32, #tpu.memory_space<vmem>>, vector<1x12xf32>
    tpu.vector_store %arg5[%c1_68, %c144_69], %127 {strides = array<i32>} : memref<2x256xf32, #tpu.memory_space<vmem>>, vector<1x12xf32>,
    %129 = vector.extract_strided_slice %60 {offsets = [13, 24], sizes = [1, 12], strides = [1, 1]} : vector<24x36xf32> to vector<1x12xf32>
    %c1_70 = arith.constant 1 : index
    %c156_71 = arith.constant 156 : index
    %130 = vector.load %arg5[%c1_70, %c156_71] : memref<2x256xf32, #tpu.memory_space<vmem>>, vector<1x12xf32>
    tpu.vector_store %arg5[%c1_70, %c156_71], %129 {strides = array<i32>} : memref<2x256xf32, #tpu.memory_space<vmem>>, vector<1x12xf32>,
    %131 = vector.extract_strided_slice %60 {offsets = [14, 24], sizes = [1, 12], strides = [1, 1]} : vector<24x36xf32> to vector<1x12xf32>
    %c1_72 = arith.constant 1 : index
    %c168_73 = arith.constant 168 : index
    %132 = vector.load %arg5[%c1_72, %c168_73] : memref<2x256xf32, #tpu.memory_space<vmem>>, vector<1x12xf32>
    tpu.vector_store %arg5[%c1_72, %c168_73], %131 {strides = array<i32>} : memref<2x256xf32, #tpu.memory_space<vmem>>, vector<1x12xf32>,
    %133 = vector.extract_strided_slice %60 {offsets = [15, 24], sizes = [1, 12], strides = [1, 1]} : vector<24x36xf32> to vector<1x12xf32>
    %c1_74 = arith.constant 1 : index
    %c180_75 = arith.constant 180 : index
    %134 = vector.load %arg5[%c1_74, %c180_75] : memref<2x256xf32, #tpu.memory_space<vmem>>, vector<1x12xf32>
    tpu.vector_store %arg5[%c1_74, %c180_75], %133 {strides = array<i32>} : memref<2x256xf32, #tpu.memory_space<vmem>>, vector<1x12xf32>,
    %135 = vector.extract_strided_slice %60 {offsets = [16, 24], sizes = [1, 12], strides = [1, 1]} : vector<24x36xf32> to vector<1x12xf32>
    %c1_76 = arith.constant 1 : index
    %c192_77 = arith.constant 192 : index
    %136 = vector.load %arg5[%c1_76, %c192_77] : memref<2x256xf32, #tpu.memory_space<vmem>>, vector<1x12xf32>
    tpu.vector_store %arg5[%c1_76, %c192_77], %135 {strides = array<i32>} : memref<2x256xf32, #tpu.memory_space<vmem>>, vector<1x12xf32>,
    %137 = vector.extract_strided_slice %60 {offsets = [17, 24], sizes = [1, 12], strides = [1, 1]} : vector<24x36xf32> to vector<1x12xf32>
    %c1_78 = arith.constant 1 : index
    %c204_79 = arith.constant 204 : index
    %138 = vector.load %arg5[%c1_78, %c204_79] : memref<2x256xf32, #tpu.memory_space<vmem>>, vector<1x12xf32>
    tpu.vector_store %arg5[%c1_78, %c204_79], %137 {strides = array<i32>} : memref<2x256xf32, #tpu.memory_space<vmem>>, vector<1x12xf32>,
    %139 = vector.extract_strided_slice %60 {offsets = [18, 24], sizes = [1, 12], strides = [1, 1]} : vector<24x36xf32> to vector<1x12xf32>
    %c1_80 = arith.constant 1 : index
    %c216_81 = arith.constant 216 : index
    %140 = vector.load %arg5[%c1_80, %c216_81] : memref<2x256xf32, #tpu.memory_space<vmem>>, vector<1x12xf32>
    tpu.vector_store %arg5[%c1_80, %c216_81], %139 {strides = array<i32>} : memref<2x256xf32, #tpu.memory_space<vmem>>, vector<1x12xf32>,
    %141 = vector.extract_strided_slice %60 {offsets = [19, 24], sizes = [1, 12], strides = [1, 1]} : vector<24x36xf32> to vector<1x12xf32>
    %c1_82 = arith.constant 1 : index
    %c228_83 = arith.constant 228 : index
    %142 = vector.load %arg5[%c1_82, %c228_83] : memref<2x256xf32, #tpu.memory_space<vmem>>, vector<1x12xf32>
    tpu.vector_store %arg5[%c1_82, %c228_83], %141 {strides = array<i32>} : memref<2x256xf32, #tpu.memory_space<vmem>>, vector<1x12xf32>,
    %c0_84 = arith.constant 0 : index
    %c0_85 = arith.constant 0 : index
    %143 = vector.load %arg5[%c0_84, %c0_85] : memref<2x256xf32, #tpu.memory_space<vmem>>, vector<2x256xf32>
    %c0_86 = arith.constant 0 : index
    %c0_87 = arith.constant 0 : index
    %144 = vector.load %arg2[%c0_86, %c0_87] : memref<256x256xf32, #tpu.memory_space<vmem>>, vector<256x256xf32>
    %cst_88 = arith.constant dense<0.000000e+00> : vector<2x256xf32>
    %145 = tpu.matmul %143, %144, %cst_88 {dimension_numbers = #tpu.dot_dimension_numbers<[1], [0], [0], [1], [0, 0, 1, 1], [], []>} : vector<2x256xf32>, vector<256x256xf32>, vector<2x256xf32> -> vector<2x256xf32>
    %146 = vector.extract_strided_slice %145 {offsets = [0, 0], sizes = [1, 128], strides = [1, 1]} : vector<2x256xf32> to vector<1x128xf32>
    %147 = vector.extract_strided_slice %145 {offsets = [1, 0], sizes = [1, 128], strides = [1, 1]} : vector<2x256xf32> to vector<1x128xf32>
    %148 = arith.subf %146, %147 : vector<1x128xf32>
    %149 = math.absf %148 : vector<1x128xf32>
    %c0_89 = arith.constant 0 : index
    %c0_90 = arith.constant 0 : index
    %150 = vector.load %arg3[%c0_89, %c0_90] : memref<520x128xf32, #tpu.memory_space<vmem>>, vector<128x128xf32>
    %cst_91 = arith.constant dense<0.000000e+00> : vector<1x128xf32>
    %151 = tpu.matmul %149, %150, %cst_91 {dimension_numbers = #tpu.dot_dimension_numbers<[1], [0], [0], [1], [0, 0, 1, 1], [], []>} : vector<1x128xf32>, vector<128x128xf32>, vector<1x128xf32> -> vector<1x128xf32>
    %cst_92 = arith.constant 0.000000e+00 : f32
    %152 = vector.broadcast %cst_92 : f32 to vector<1x128xf32>
    %153 = arith.subf %152, %151 : vector<1x128xf32>
    %154 = math.exp %153 : vector<1x128xf32>
    %c128 = arith.constant 128 : index
    %c0_93 = arith.constant 0 : index
    %155 = vector.load %arg3[%c128, %c0_93] : memref<520x128xf32, #tpu.memory_space<vmem>>, vector<128x128xf32>
    %cst_94 = arith.constant dense<0.000000e+00> : vector<1x128xf32>
    %156 = tpu.matmul %154, %155, %cst_94 {dimension_numbers = #tpu.dot_dimension_numbers<[1], [0], [0], [1], [0, 0, 1, 1], [], []>} : vector<1x128xf32>, vector<128x128xf32>, vector<1x128xf32> -> vector<1x128xf32>
    %c512 = arith.constant 512 : index
    %c0_95 = arith.constant 0 : index
    %157 = vector.load %arg3[%c512, %c0_95] : memref<520x128xf32, #tpu.memory_space<vmem>>, vector<8x128xf32>
    %158 = vector.extract_strided_slice %157 {offsets = [0, 0], sizes = [1, 128], strides = [1, 1]} : vector<8x128xf32> to vector<1x128xf32>
    %159 = vector.extract_strided_slice %157 {offsets = [1, 0], sizes = [1, 128], strides = [1, 1]} : vector<8x128xf32> to vector<1x128xf32>
    %160 = vector.extract_strided_slice %157 {offsets = [2, 0], sizes = [1, 128], strides = [1, 1]} : vector<8x128xf32> to vector<1x128xf32>
    %161 = vector.extract_strided_slice %145 {offsets = [0, 128], sizes = [2, 128], strides = [1, 1]} : vector<2x256xf32> to vector<2x128xf32>
    %162 = vector.broadcast %156 : vector<1x128xf32> to vector<2x128xf32>
    %163 = arith.addf %161, %162 : vector<2x128xf32>
    %164 = vector.broadcast %158 : vector<1x128xf32> to vector<2x128xf32>
    %165 = arith.addf %163, %164 : vector<2x128xf32>
    %c256 = arith.constant 256 : index
    %c0_96 = arith.constant 0 : index
    %166 = vector.load %arg3[%c256, %c0_96] : memref<520x128xf32, #tpu.memory_space<vmem>>, vector<128x128xf32>
    %cst_97 = arith.constant dense<0.000000e+00> : vector<2x128xf32>
    %167 = tpu.matmul %165, %166, %cst_97 {dimension_numbers = #tpu.dot_dimension_numbers<[1], [0], [0], [1], [0, 0, 1, 1], [], []>} : vector<2x128xf32>, vector<128x128xf32>, vector<2x128xf32> -> vector<2x128xf32>
    %168 = vector.broadcast %159 : vector<1x128xf32> to vector<2x128xf32>
    %169 = arith.addf %167, %168 : vector<2x128xf32>
    %c384 = arith.constant 384 : index
    %c0_98 = arith.constant 0 : index
    %170 = vector.load %arg3[%c384, %c0_98] : memref<520x128xf32, #tpu.memory_space<vmem>>, vector<128x128xf32>
    %cst_99 = arith.constant dense<0.000000e+00> : vector<2x128xf32>
    %171 = tpu.matmul %169, %170, %cst_99 {dimension_numbers = #tpu.dot_dimension_numbers<[1], [0], [0], [1], [0, 0, 1, 1], [], []>} : vector<2x128xf32>, vector<128x128xf32>, vector<2x128xf32> -> vector<2x128xf32>
    %172 = vector.broadcast %160 : vector<1x128xf32> to vector<2x128xf32>
    %173 = arith.addf %171, %172 : vector<2x128xf32>
    %174 = vector.extract_strided_slice %173 {offsets = [0, 0], sizes = [2, 2], strides = [1, 1]} : vector<2x128xf32> to vector<2x2xf32>
    %175 = math.absf %174 : vector<2x2xf32>
    %cst_100 = arith.constant 0.000000e+00 : f32
    %176 = vector.broadcast %cst_100 : f32 to vector<2x2xf32>
    %177 = arith.subf %176, %175 : vector<2x2xf32>
    %178 = math.exp %177 : vector<2x2xf32>
    %cst_101 = arith.constant 0.000000e+00 : f32
    %179 = vector.broadcast %cst_101 : f32 to vector<2x2xf32>
    %180 = arith.cmpf oge, %174, %179 : vector<2x2xf32>
    %cst_102 = arith.constant 1.000000e+00 : f32
    %181 = vector.broadcast %cst_102 : f32 to vector<2x2xf32>
    %182 = arith.addf %181, %178 : vector<2x2xf32>
    %cst_103 = arith.constant 1.000000e+00 : f32
    %183 = vector.broadcast %cst_103 : f32 to vector<2x2xf32>
    %184 = arith.divf %183, %182 : vector<2x2xf32>
    %cst_104 = arith.constant 1.000000e+00 : f32
    %185 = vector.broadcast %cst_104 : f32 to vector<2x2xf32>
    %186 = arith.addf %185, %178 : vector<2x2xf32>
    %187 = arith.divf %178, %186 : vector<2x2xf32>
    %188 = arith.select %180, %184, %187 : vector<2x2xi1>, vector<2x2xf32>
    %c0_105 = arith.constant 0 : index
    %c0_106 = arith.constant 0 : index
    %189 = vector.load %arg4[%c0_105, %c0_106] : memref<2x2xf32, #tpu.memory_space<vmem>>, vector<2x2xf32>
    tpu.vector_store %arg4[%c0_105, %c0_106], %188 {strides = array<i32>} : memref<2x2xf32, #tpu.memory_space<vmem>>, vector<2x2xf32>,
    return
  }
}

</mosaic_0001>

<llo_original>
// kernel: tpu_custom_call.1
$region0: #{tpu_custom_call.1}
  #allocation0 [shape = 'u32[]', space=smem, size = 0x4, offset = 0x4, fixed_abs, tag = 'smem constant byte address 0x4 - core index']
  #allocation1 [shape = 'u32[144,128]{1,0:T(1,128)}', space=vmem, size = 0x12000, scoped, tag = 'internal scratch']
  #allocation2 [shape = 'f32[2,256]{1,0:T(2,128)}', space=vmem, size = 0x800, scoped, tag = 'scratch operand']
  %s0 = inlined_call_operand.vmem [shape: f32[16,48], index: 0, kind: input, shape index: {}]
  %s1 = inlined_call_operand.vmem [shape: f32[288,16], index: 1, kind: input, shape index: {}]
  %s2 = inlined_call_operand.hbm [shape: f32[256,256], index: 2, kind: input, shape index: {}]
  %s3 = inlined_call_operand.hbm [shape: f32[520,128], index: 3, kind: input, shape index: {}]
  %s4 = inlined_call_operand.hbm [shape: f32[2,2], index: 4, kind: output, shape index: {}]
  %s5 = sld [smem:[#allocation0]]
  $region34: #{tpu_custom_call.1} parent=0
    _
  %s7 = ssub.s32 1, %s5
  %s8 = scalar_select 0, %s7, %s5
  $region1: #{tpu_custom_call.1} parent=0
    #allocation3 [shape = 'u8[262144]{0}', space=vmem, size = 0x40000, scoped, tag = 'input window, operand 2, single buffered']
    #allocation4 [shape = 's32[1]{0}', space=sflag, size = 0x4, scoped, tag = 'scoped memory for tpu_custom_call.1']
    #allocation5 [shape = 's32[1]{0}', space=sflag, size = 0x4, scoped, tag = 'scoped memory for tpu_custom_call.1']
    #allocation6 [shape = 'u8[266240]{0}', space=vmem, size = 0x41000, scoped, tag = 'input window, operand 3, single buffered']
    #allocation7 [shape = 's32[1]{0}', space=sflag, size = 0x4, scoped, tag = 'scoped memory for tpu_custom_call.1']
    #allocation8 [shape = 'u8[1024]{0}', space=vmem, size = 0x400, scoped, tag = 'output window, operand 0, single buffered']
    %9 = vsyncpa [#allocation4], 0
    %10 = vsyncpa [#allocation7], 0
    %11 = vsyncpa [#allocation5], 0
    // Predicated region
    $region2: #{tpu_custom_call.1} parent=1 // pred_check
      _
    $region3: #{tpu_custom_call.1} parent=1 // pred_check_branch
      %13 = sbr.rel (0) target = $region5
    $region4: #{tpu_custom_call.1} parent=1 // pred_region
      _
    $region5: #{tpu_custom_call.1} parent=1 // pred_fallthru
      _
    // Predicated region
    $region6: #{tpu_custom_call.1} parent=1 // pred_check
      _
    $region7: #{tpu_custom_call.1} parent=1 // pred_check_branch
      %15 = sbr.rel (0) target = $region9
    $region8: #{tpu_custom_call.1} parent=1 // pred_region
      _
    $region9: #{tpu_custom_call.1} parent=1 // pred_fallthru
      _
    // Predicated region
    $region10: #{tpu_custom_call.1} parent=1 // pred_check
      _
    $region11: #{tpu_custom_call.1} parent=1 // pred_check_branch
      %17 = sbr.rel (0) target = $region13
    $region12: #{tpu_custom_call.1} parent=1 // pred_region
      %s19 = ssub.s32 8192, 8192
      %20 = vsyncadd [#allocation4], %s19
      %s21 = sshll.u32 [#allocation3], 4
      %s22 = int_to_ptr.vmem [resolvable:$true] %s21
      %27 = dma.hbm_to_vmem [thread:$0]  %s2, 8192, %s22, [#allocation4], 256, 256, 16
    $region13: #{tpu_custom_call.1} parent=1 // pred_fallthru
      _
    // Predicated region
    $region14: #{tpu_custom_call.1} parent=1 // pred_check
      _
    $region15: #{tpu_custom_call.1} parent=1 // pred_check_branch
      %29 = sbr.rel (0) target = $region17
    $region16: #{tpu_custom_call.1} parent=1 // pred_region
      %s31 = ssub.s32 8320, 8320
      %32 = vsyncadd [#allocation7], %s31
      %s33 = sshll.u32 [#allocation6], 4
      %s34 = int_to_ptr.vmem [resolvable:$true] %s33
      %39 = dma.hbm_to_vmem [thread:$0]  %s3, 8320, %s34, [#allocation7], 128, 128, 8
    $region17: #{tpu_custom_call.1} parent=1 // pred_fallthru
      _
    // Predicated region
    $region18: #{tpu_custom_call.1} parent=1 // pred_check
      _
    $region19: #{tpu_custom_call.1} parent=1 // pred_check_branch
      %41 = sbr.rel (0) target = $region21
    $region20: #{tpu_custom_call.1} parent=1 // pred_region
      %42 = dma.done [#allocation4], 8192
    $region21: #{tpu_custom_call.1} parent=1 // pred_fallthru
      _
    // Predicated region
    $region22: #{tpu_custom_call.1} parent=1 // pred_check
      _
    $region23: #{tpu_custom_call.1} parent=1 // pred_check_branch
      %44 = sbr.rel (0) target = $region25
    $region24: #{tpu_custom_call.1} parent=1 // pred_region
      %45 = dma.done [#allocation7], 8320
    $region25: #{tpu_custom_call.1} parent=1 // pred_fallthru
      _
    %v46 = vld [vmem:[%s0] sm:$0xff]
    %v47 = vld [vmem:[%s0 + $0x8] sm:$0xff]
    %v48 = vld [vmem:[%s1] sm:$0xff]
    %v49 = vld [vmem:[%s1 + $0x8] sm:$0xff]
    %v50 = vld [vmem:[%s1 + $0x10] sm:$0xff]
    %v51 = vld [vmem:[%s1 + $0x18] sm:$0xff]
    %v52 = vld [vmem:[%s1 + $0x20] sm:$0xff]
    %v53 = vld [vmem:[%s1 + $0x28] sm:$0xff]
    %v54 = vld [vmem:[%s1 + $0xd8] sm:$0xff]
    %v55 = vld [vmem:[%s1 + $0xe0] sm:$0xff]
    %vm56 = vcmask 130048
    %v58 = vsel %vm56, %v48, 0
    %v61 = vsel %vm56, %v49, 0
    %v64 = vsel %vm56, %v50, 0
    %v67 = vsel %vm56, %v51, 0
    %v70 = vsel %vm56, %v52, 0
    %v73 = vsel %vm56, %v53, 0
    %75 = vmatprep.subr.mxu0 0.0
    %76 = vmatpush1.msra.mxu0 %v46
    %77 = vmatprep.subr.mxu0 0.0
    %78 = vmatpush1.msra.mxu0 %v47
    %79 = vmatprep.subr.mxu0 0.0
    %80 = vmatpush1.msra.mxu0 0.0
    %81 = vmatprep.subr.mxu0 0.0
    %82 = vmatpush1.msra.mxu0 0.0
    %83 = vmatprep.subr.mxu0 0.0
    %84 = vmatpush1.msra.mxu0 0.0
    %85 = vmatprep.subr.mxu0 0.0
    %86 = vmatpush1.msra.mxu0 0.0
    %87 = vmatprep.subr.mxu0 0.0
    %88 = vmatpush1.msra.mxu0 0.0
    %89 = vmatprep.subr.mxu0 0.0
    %90 = vmatpush1.msra.mxu0 0.0
    %91 = vmatprep.subr.mxu0 0.0
    %92 = vmatpush1.msra.mxu0 0.0
    %93 = vmatprep.subr.mxu0 0.0
    %94 = vmatpush1.msra.mxu0 0.0
    %95 = vmatprep.subr.mxu0 0.0
    %96 = vmatpush1.msra.mxu0 0.0
    %97 = vmatprep.subr.mxu0 0.0
    %98 = vmatpush1.msra.mxu0 0.0
    %99 = vmatprep.subr.mxu0 0.0
    %100 = vmatpush1.msra.mxu0 0.0
    %101 = vmatprep.subr.mxu0 0.0
    %102 = vmatpush1.msra.mxu0 0.0
    %103 = vmatprep.subr.mxu0 0.0
    %104 = vmatpush1.msra.mxu0 0.0
    %105 = vmatprep.subr.mxu0 0.0
    %106 = vmatpush1.msra.mxu0 0.0
    %107 = vmatprep.subr.mxu0 0.0
    %108 = vmatpush1.msra.mxu0 0.0
    %109 = vmatprep.subr.mxu0 0.0
    %110 = vmatpush1.msra.mxu0 0.0
    %111 = vmatprep.subr.mxu0 0.0
    %112 = vmatpush1.msra.mxu0 0.0
    %113 = vmatprep.subr.mxu0 0.0
    %114 = vmatpush1.msra.mxu0 0.0
    %115 = vmatprep.subr.mxu0 0.0
    %116 = vmatpush1.msra.mxu0 0.0
    %117 = vmatprep.subr.mxu0 0.0
    %118 = vmatpush1.msra.mxu0 0.0
    %119 = vmatprep.subr.mxu0 0.0
    %120 = vmatpush1.msra.mxu0 0.0
    %121 = vmatprep.subr.mxu0 0.0
    %122 = vmatpush1.msra.mxu0 0.0
    %123 = vmatprep.subr.mxu0 0.0
    %124 = vmatpush1.msra.mxu0 0.0
    %125 = vmatprep.subr.mxu0 0.0
    %126 = vmatpush1.msra.mxu0 0.0
    %127 = vmatprep.subr.mxu0 0.0
    %128 = vmatpush1.msra.mxu0 0.0
    %129 = vmatprep.subr.mxu0 0.0
    %130 = vmatpush1.msra.mxu0 0.0
    %131 = vmatprep.subr.mxu0 0.0
    %132 = vmatpush1.msra.mxu0 0.0
    %133 = vmatprep.subr.mxu0 0.0
    %134 = vmatpush1.msra.mxu0 0.0
    %135 = vmatprep.subr.mxu0 0.0
    %136 = vmatpush1.msra.mxu0 0.0
    %137 = vmatprep.subr.mxu0 0.0
    %138 = vmatpush1.msra.mxu0 0.0
    %139 = vmatprep.mubr.f32.mxu0 0.0
    %140 = vmatmul.mubr.f32.gmra.mrb[0].mxu0 %v58
    %v141 = vpop.f32.mrb[0].mxu0
    %v142 = vadd.f32 0.0, %v141
    %v143 = vpop.f32.mrb[0].mxu0
    %144 = vmatprep.mubr.f32.mxu0 0.0
    %145 = vmatmul.mubr.f32.gmra.mrb[0].mxu0 %v61
    %v146 = vpop.f32.mrb[0].mxu0
    %v147 = vadd.f32 0.0, %v146
    %v148 = vpop.f32.mrb[0].mxu0
    %149 = vmatprep.mubr.f32.mxu0 0.0
    %150 = vmatmul.mubr.f32.gmra.mrb[0].mxu0 %v64
    %v151 = vpop.f32.mrb[0].mxu0
    %v152 = vadd.f32 0.0, %v151
    %v153 = vpop.f32.mrb[0].mxu0
    %154 = vmatprep.mubr.f32.mxu0 0.0
    %155 = vmatmul.mubr.f32.gmra.mrb[0].mxu0 %v67
    %v156 = vpop.f32.mrb[0].mxu0
    %v157 = vadd.f32 0.0, %v156
    %v158 = vpop.f32.mrb[0].mxu0
    %159 = vmatprep.mubr.f32.mxu0 0.0
    %160 = vmatmul.mubr.f32.gmra.mrb[0].mxu0 %v70
    %v161 = vpop.f32.mrb[0].mxu0
    %v162 = vadd.f32 0.0, %v161
    %v163 = vpop.f32.mrb[0].mxu0
    %164 = vmatprep.mubr.f32.mxu0 0.0
    %165 = vmatmul.mubr.f32.gmra.mrb[0].mxu0 %v73
    %v166 = vpop.f32.mrb[0].mxu0
    %v167 = vadd.f32 0.0, %v166
    %v168 = vpop.f32.mrb[0].mxu0
    %169 = vdwg.mxu0
    %172 = vrot.lane.b32.xlu0 %v152, 127
    %v173 = vpop.permute.xlu0 %172
    %174 = vrot.lane.b32.xlu0 %v157, 127
    %v175 = vpop.permute.xlu0 %174
    %v178 = vadd.f32 %v142, %v173
    %v179 = vadd.f32 %v147, %v175
    %182 = vrot.lane.b32.xlu0 %v162, 126
    %v183 = vpop.permute.xlu0 %182
    %184 = vrot.lane.b32.xlu0 %v167, 126
    %v185 = vpop.permute.xlu0 %184
    %v188 = vadd.f32 %v178, %v183
    %v189 = vadd.f32 %v179, %v185
    %191 = vset.pattern.permute.xlu0 0
    %192 = vperm.xlu0 %191, %v54
    %v193 = vpop.permute.xlu0 %192
    %196 = vset.pattern.permute.xlu0 0
    %197 = vperm.xlu0 %196, %v55
    %v198 = vpop.permute.xlu0 %197
    %v200 = vadd.f32 %v188, %v193
    %v201 = vadd.f32 %v189, %v198
    %v202 = vmax.f32 %v200, 0.0
    %v203 = vmax.f32 %v201, 0.0
    %206 = vrot.lane.b32.xlu0 %v202, 127
    %v207 = vpop.permute.xlu0 %206
    %208 = vrot.lane.b32.xlu0 %v203, 127
    %v209 = vpop.permute.xlu0 %208
    %v212 = vmax.f32 %v202, %v207
    %v213 = vmax.f32 %v203, %v209
    %v214 = vld [vmem:[%s1 + $0x30] sm:$0xff]
    %v215 = vld [vmem:[%s1 + $0x38] sm:$0xff]
    %v216 = vld [vmem:[%s1 + $0x40] sm:$0xff]
    %v217 = vld [vmem:[%s1 + $0x48] sm:$0xff]
    %v218 = vld [vmem:[%s1 + $0x50] sm:$0xff]
    %v219 = vld [vmem:[%s1 + $0x58] sm:$0xff]
    %v220 = vld [vmem:[%s1 + $0xe8] sm:$0xff]
    %v221 = vld [vmem:[%s1 + $0xf0] sm:$0xff]
    %v223 = vsel %vm56, %v214, 0
    %v226 = vsel %vm56, %v215, 0
    %v229 = vsel %vm56, %v216, 0
    %v232 = vsel %vm56, %v217, 0
    %v235 = vsel %vm56, %v218, 0
    %v238 = vsel %vm56, %v219, 0
    %240 = vmatprep.subr.mxu0 0.0
    %241 = vmatpush1.msra.mxu0 %v212
    %242 = vmatprep.subr.mxu0 0.0
    %243 = vmatpush1.msra.mxu0 %v213
    %244 = vmatprep.subr.mxu0 0.0
    %245 = vmatpush1.msra.mxu0 0.0
    %246 = vmatprep.subr.mxu0 0.0
    %247 = vmatpush1.msra.mxu0 0.0
    %248 = vmatprep.subr.mxu0 0.0
    %249 = vmatpush1.msra.mxu0 0.0
    %250 = vmatprep.subr.mxu0 0.0
    %251 = vmatpush1.msra.mxu0 0.0
    %252 = vmatprep.subr.mxu0 0.0
    %253 = vmatpush1.msra.mxu0 0.0
    %254 = vmatprep.subr.mxu0 0.0
    %255 = vmatpush1.msra.mxu0 0.0
    %256 = vmatprep.subr.mxu0 0.0
    %257 = vmatpush1.msra.mxu0 0.0
    %258 = vmatprep.subr.mxu0 0.0
    %259 = vmatpush1.msra.mxu0 0.0
    %260 = vmatprep.subr.mxu0 0.0
    %261 = vmatpush1.msra.mxu0 0.0
    %262 = vmatprep.subr.mxu0 0.0
    %263 = vmatpush1.msra.mxu0 0.0
    %264 = vmatprep.subr.mxu0 0.0
    %265 = vmatpush1.msra.mxu0 0.0
    %266 = vmatprep.subr.mxu0 0.0
    %267 = vmatpush1.msra.mxu0 0.0
    %268 = vmatprep.subr.mxu0 0.0
    %269 = vmatpush1.msra.mxu0 0.0
    %270 = vmatprep.subr.mxu0 0.0
    %271 = vmatpush1.msra.mxu0 0.0
    %272 = vmatprep.subr.mxu0 0.0
    %273 = vmatpush1.msra.mxu0 0.0
    %274 = vmatprep.subr.mxu0 0.0
    %275 = vmatpush1.msra.mxu0 0.0
    %276 = vmatprep.subr.mxu0 0.0
    %277 = vmatpush1.msra.mxu0 0.0
    %278 = vmatprep.subr.mxu0 0.0
    %279 = vmatpush1.msra.mxu0 0.0
    %280 = vmatprep.subr.mxu0 0.0
    %281 = vmatpush1.msra.mxu0 0.0
    %282 = vmatprep.subr.mxu0 0.0
    %283 = vmatpush1.msra.mxu0 0.0
    %284 = vmatprep.subr.mxu0 0.0
    %285 = vmatpush1.msra.mxu0 0.0
    %286 = vmatprep.subr.mxu0 0.0
    %287 = vmatpush1.msra.mxu0 0.0
    %288 = vmatprep.subr.mxu0 0.0
    %289 = vmatpush1.msra.mxu0 0.0
    %290 = vmatprep.subr.mxu0 0.0
    %291 = vmatpush1.msra.mxu0 0.0
    %292 = vmatprep.subr.mxu0 0.0
    %293 = vmatpush1.msra.mxu0 0.0
    %294 = vmatprep.subr.mxu0 0.0
    %295 = vmatpush1.msra.mxu0 0.0
    %296 = vmatprep.subr.mxu0 0.0
    %297 = vmatpush1.msra.mxu0 0.0
    %298 = vmatprep.subr.mxu0 0.0
    %299 = vmatpush1.msra.mxu0 0.0
    %300 = vmatprep.subr.mxu0 0.0
    %301 = vmatpush1.msra.mxu0 0.0
    %302 = vmatprep.subr.mxu0 0.0
    %303 = vmatpush1.msra.mxu0 0.0
    %304 = vmatprep.mubr.f32.mxu0 0.0
    %305 = vmatmul.mubr.f32.gmra.mrb[0].mxu0 %v223
    %v306 = vpop.f32.mrb[0].mxu0
    %v307 = vadd.f32 0.0, %v306
    %v308 = vpop.f32.mrb[0].mxu0
    %309 = vmatprep.mubr.f32.mxu0 0.0
    %310 = vmatmul.mubr.f32.gmra.mrb[0].mxu0 %v226
    %v311 = vpop.f32.mrb[0].mxu0
    %v312 = vadd.f32 0.0, %v311
    %v313 = vpop.f32.mrb[0].mxu0
    %314 = vmatprep.mubr.f32.mxu0 0.0
    %315 = vmatmul.mubr.f32.gmra.mrb[0].mxu0 %v229
    %v316 = vpop.f32.mrb[0].mxu0
    %v317 = vadd.f32 0.0, %v316
    %v318 = vpop.f32.mrb[0].mxu0
    %319 = vmatprep.mubr.f32.mxu0 0.0
    %320 = vmatmul.mubr.f32.gmra.mrb[0].mxu0 %v232
    %v321 = vpop.f32.mrb[0].mxu0
    %v322 = vadd.f32 0.0, %v321
    %v323 = vpop.f32.mrb[0].mxu0
    %324 = vmatprep.mubr.f32.mxu0 0.0
    %325 = vmatmul.mubr.f32.gmra.mrb[0].mxu0 %v235
    %v326 = vpop.f32.mrb[0].mxu0
    %v327 = vadd.f32 0.0, %v326
    %v328 = vpop.f32.mrb[0].mxu0
    %329 = vmatprep.mubr.f32.mxu0 0.0
    %330 = vmatmul.mubr.f32.gmra.mrb[0].mxu0 %v238
    %v331 = vpop.f32.mrb[0].mxu0
    %v332 = vadd.f32 0.0, %v331
    %v333 = vpop.f32.mrb[0].mxu0
    %334 = vdwg.mxu0
    %337 = vrot.lane.b32.xlu0 %v317, 127
    %v338 = vpop.permute.xlu0 %337
    %339 = vrot.lane.b32.xlu0 %v322, 127
    %v340 = vpop.permute.xlu0 %339
    %v343 = vadd.f32 %v307, %v338
    %v344 = vadd.f32 %v312, %v340
    %347 = vrot.lane.b32.xlu0 %v327, 126
    %v348 = vpop.permute.xlu0 %347
    %349 = vrot.lane.b32.xlu0 %v332, 126
    %v350 = vpop.permute.xlu0 %349
    %v353 = vadd.f32 %v343, %v348
    %v354 = vadd.f32 %v344, %v350
    %356 = vset.pattern.permute.xlu0 0
    %357 = vperm.xlu0 %356, %v220
    %v358 = vpop.permute.xlu0 %357
    %361 = vset.pattern.permute.xlu0 0
    %362 = vperm.xlu0 %361, %v221
    %v363 = vpop.permute.xlu0 %362
    %v365 = vadd.f32 %v353, %v358
    %v366 = vadd.f32 %v354, %v363
    %v367 = vmax.f32 %v365, 0.0
    %v368 = vmax.f32 %v366, 0.0
    %371 = vrot.lane.b32.xlu0 %v367, 127
    %v372 = vpop.permute.xlu0 %371
    %373 = vrot.lane.b32.xlu0 %v368, 127
    %v374 = vpop.permute.xlu0 %373
    %v377 = vmax.f32 %v367, %v372
    %v378 = vmax.f32 %v368, %v374
    %v379 = vld [vmem:[%s1 + $0x60] sm:$0xff]
    %v380 = vld [vmem:[%s1 + $0x68] sm:$0xff]
    %v381 = vld [vmem:[%s1 + $0x70] sm:$0xff]
    %v382 = vld [vmem:[%s1 + $0x78] sm:$0xff]
    %v383 = vld [vmem:[%s1 + $0x80] sm:$0xff]
    %v384 = vld [vmem:[%s1 + $0x88] sm:$0xff]
    %v385 = vld [vmem:[%s1 + $0xf8] sm:$0xff]
    %v386 = vld [vmem:[%s1 + $0x100] sm:$0xff]
    %v388 = vsel %vm56, %v379, 0
    %v391 = vsel %vm56, %v380, 0
    %v394 = vsel %vm56, %v381, 0
    %v397 = vsel %vm56, %v382, 0
    %v400 = vsel %vm56, %v383, 0
    %v403 = vsel %vm56, %v384, 0
    %405 = vmatprep.subr.mxu0 0.0
    %406 = vmatpush1.msra.mxu0 %v377
    %407 = vmatprep.subr.mxu0 0.0
    %408 = vmatpush1.msra.mxu0 %v378
    %409 = vmatprep.subr.mxu0 0.0
    %410 = vmatpush1.msra.mxu0 0.0
    %411 = vmatprep.subr.mxu0 0.0
    %412 = vmatpush1.msra.mxu0 0.0
    %413 = vmatprep.subr.mxu0 0.0
    %414 = vmatpush1.msra.mxu0 0.0
    %415 = vmatprep.subr.mxu0 0.0
    %416 = vmatpush1.msra.mxu0 0.0
    %417 = vmatprep.subr.mxu0 0.0
    %418 = vmatpush1.msra.mxu0 0.0
    %419 = vmatprep.subr.mxu0 0.0
    %420 = vmatpush1.msra.mxu0 0.0
    %421 = vmatprep.subr.mxu0 0.0
    %422 = vmatpush1.msra.mxu0 0.0
    %423 = vmatprep.subr.mxu0 0.0
    %424 = vmatpush1.msra.mxu0 0.0
    %425 = vmatprep.subr.mxu0 0.0
    %426 = vmatpush1.msra.mxu0 0.0
    %427 = vmatprep.subr.mxu0 0.0
    %428 = vmatpush1.msra.mxu0 0.0
    %429 = vmatprep.subr.mxu0 0.0
    %430 = vmatpush1.msra.mxu0 0.0
    %431 = vmatprep.subr.mxu0 0.0
    %432 = vmatpush1.msra.mxu0 0.0
    %433 = vmatprep.subr.mxu0 0.0
    %434 = vmatpush1.msra.mxu0 0.0
    %435 = vmatprep.subr.mxu0 0.0
    %436 = vmatpush1.msra.mxu0 0.0
    %437 = vmatprep.subr.mxu0 0.0
    %438 = vmatpush1.msra.mxu0 0.0
    %439 = vmatprep.subr.mxu0 0.0
    %440 = vmatpush1.msra.mxu0 0.0
    %441 = vmatprep.subr.mxu0 0.0
    %442 = vmatpush1.msra.mxu0 0.0
    %443 = vmatprep.subr.mxu0 0.0
    %444 = vmatpush1.msra.mxu0 0.0
    %445 = vmatprep.subr.mxu0 0.0
    %446 = vmatpush1.msra.mxu0 0.0
    %447 = vmatprep.subr.mxu0 0.0
    %448 = vmatpush1.msra.mxu0 0.0
    %449 = vmatprep.subr.mxu0 0.0
    %450 = vmatpush1.msra.mxu0 0.0
    %451 = vmatprep.subr.mxu0 0.0
    %452 = vmatpush1.msra.mxu0 0.0
    %453 = vmatprep.subr.mxu0 0.0
    %454 = vmatpush1.msra.mxu0 0.0
    %455 = vmatprep.subr.mxu0 0.0
    %456 = vmatpush1.msra.mxu0 0.0
    %457 = vmatprep.subr.mxu0 0.0
    %458 = vmatpush1.msra.mxu0 0.0
    %459 = vmatprep.subr.mxu0 0.0
    %460 = vmatpush1.msra.mxu0 0.0
    %461 = vmatprep.subr.mxu0 0.0
    %462 = vmatpush1.msra.mxu0 0.0
    %463 = vmatprep.subr.mxu0 0.0
    %464 = vmatpush1.msra.mxu0 0.0
    %465 = vmatprep.subr.mxu0 0.0
    %466 = vmatpush1.msra.mxu0 0.0
    %467 = vmatprep.subr.mxu0 0.0
    %468 = vmatpush1.msra.mxu0 0.0
    %469 = vmatprep.mubr.f32.mxu0 0.0
    %470 = vmatmul.mubr.f32.gmra.mrb[0].mxu0 %v388
    %v471 = vpop.f32.mrb[0].mxu0
    %v472 = vadd.f32 0.0, %v471
    %v473 = vpop.f32.mrb[0].mxu0
    %474 = vmatprep.mubr.f32.mxu0 0.0
    %475 = vmatmul.mubr.f32.gmra.mrb[0].mxu0 %v391
    %v476 = vpop.f32.mrb[0].mxu0
    %v477 = vadd.f32 0.0, %v476
    %v478 = vpop.f32.mrb[0].mxu0
    %479 = vmatprep.mubr.f32.mxu0 0.0
    %480 = vmatmul.mubr.f32.gmra.mrb[0].mxu0 %v394
    %v481 = vpop.f32.mrb[0].mxu0
    %v482 = vadd.f32 0.0, %v481
    %v483 = vpop.f32.mrb[0].mxu0
    %484 = vmatprep.mubr.f32.mxu0 0.0
    %485 = vmatmul.mubr.f32.gmra.mrb[0].mxu0 %v397
    %v486 = vpop.f32.mrb[0].mxu0
    %v487 = vadd.f32 0.0, %v486
    %v488 = vpop.f32.mrb[0].mxu0
    %489 = vmatprep.mubr.f32.mxu0 0.0
    %490 = vmatmul.mubr.f32.gmra.mrb[0].mxu0 %v400
    %v491 = vpop.f32.mrb[0].mxu0
    %v492 = vadd.f32 0.0, %v491
    %v493 = vpop.f32.mrb[0].mxu0
    %494 = vmatprep.mubr.f32.mxu0 0.0
    %495 = vmatmul.mubr.f32.gmra.mrb[0].mxu0 %v403
    %v496 = vpop.f32.mrb[0].mxu0
    %v497 = vadd.f32 0.0, %v496
    %v498 = vpop.f32.mrb[0].mxu0
    %499 = vdwg.mxu0
    %502 = vrot.lane.b32.xlu0 %v482, 127
    %v503 = vpop.permute.xlu0 %502
    %504 = vrot.lane.b32.xlu0 %v487, 127
    %v505 = vpop.permute.xlu0 %504
    %v508 = vadd.f32 %v472, %v503
    %v509 = vadd.f32 %v477, %v505
    %512 = vrot.lane.b32.xlu0 %v492, 126
    %v513 = vpop.permute.xlu0 %512
    %514 = vrot.lane.b32.xlu0 %v497, 126
    %v515 = vpop.permute.xlu0 %514
    %v518 = vadd.f32 %v508, %v513
    %v519 = vadd.f32 %v509, %v515
    %521 = vset.pattern.permute.xlu0 0
    %522 = vperm.xlu0 %521, %v385
    %v523 = vpop.permute.xlu0 %522
    %526 = vset.pattern.permute.xlu0 0
    %527 = vperm.xlu0 %526, %v386
    %v528 = vpop.permute.xlu0 %527
    %v530 = vadd.f32 %v518, %v523
    %v531 = vadd.f32 %v519, %v528
    %v532 = vmax.f32 %v530, 0.0
    %v533 = vmax.f32 %v531, 0.0
    %536 = vrot.lane.b32.xlu0 %v532, 127
    %v537 = vpop.permute.xlu0 %536
    %538 = vrot.lane.b32.xlu0 %v533, 127
    %v539 = vpop.permute.xlu0 %538
    %v542 = vmax.f32 %v532, %v537
    %v543 = vmax.f32 %v533, %v539
    %v544 = vld [vmem:[%s1 + $0x90] sm:$0xff]
    %v545 = vld [vmem:[%s1 + $0x98] sm:$0xff]
    %v546 = vld [vmem:[%s1 + $0xa0] sm:$0xff]
    %v547 = vld [vmem:[%s1 + $0xa8] sm:$0xff]
    %v548 = vld [vmem:[%s1 + $0xb0] sm:$0xff]
    %v549 = vld [vmem:[%s1 + $0xb8] sm:$0xff]
    %v550 = vld [vmem:[%s1 + $0xc0] sm:$0xff]
    %v551 = vld [vmem:[%s1 + $0xc8] sm:$0xff]
    %v552 = vld [vmem:[%s1 + $0xd0] sm:$0xff]
    %v553 = vld [vmem:[%s1 + $0x108] sm:$0xff]
    %v554 = vld [vmem:[%s1 + $0x110] sm:$0xff]
    %v555 = vld [vmem:[%s1 + $0x118] sm:$0xff]
    %v557 = vsel %vm56, %v544, 0
    %v560 = vsel %vm56, %v545, 0
    %v563 = vsel %vm56, %v546, 0
    %v566 = vsel %vm56, %v547, 0
    %v569 = vsel %vm56, %v548, 0
    %v572 = vsel %vm56, %v549, 0
    %v575 = vsel %vm56, %v550, 0
    %v578 = vsel %vm56, %v551, 0
    %v581 = vsel %vm56, %v552, 0
    %583 = vmatprep.subr.mxu0 0.0
    %584 = vmatpush1.msra.mxu0 %v542
    %585 = vmatprep.subr.mxu0 0.0
    %586 = vmatpush1.msra.mxu0 %v543
    %587 = vmatprep.subr.mxu0 0.0
    %588 = vmatpush1.msra.mxu0 0.0
    %589 = vmatprep.subr.mxu0 0.0
    %590 = vmatpush1.msra.mxu0 0.0
    %591 = vmatprep.subr.mxu0 0.0
    %592 = vmatpush1.msra.mxu0 0.0
    %593 = vmatprep.subr.mxu0 0.0
    %594 = vmatpush1.msra.mxu0 0.0
    %595 = vmatprep.subr.mxu0 0.0
    %596 = vmatpush1.msra.mxu0 0.0
    %597 = vmatprep.subr.mxu0 0.0
    %598 = vmatpush1.msra.mxu0 0.0
    %599 = vmatprep.subr.mxu0 0.0
    %600 = vmatpush1.msra.mxu0 0.0
    %601 = vmatprep.subr.mxu0 0.0
    %602 = vmatpush1.msra.mxu0 0.0
    %603 = vmatprep.subr.mxu0 0.0
    %604 = vmatpush1.msra.mxu0 0.0
    %605 = vmatprep.subr.mxu0 0.0
    %606 = vmatpush1.msra.mxu0 0.0
    %607 = vmatprep.subr.mxu0 0.0
    %608 = vmatpush1.msra.mxu0 0.0
    %609 = vmatprep.subr.mxu0 0.0
    %610 = vmatpush1.msra.mxu0 0.0
    %611 = vmatprep.subr.mxu0 0.0
    %612 = vmatpush1.msra.mxu0 0.0
    %613 = vmatprep.subr.mxu0 0.0
    %614 = vmatpush1.msra.mxu0 0.0
    %615 = vmatprep.subr.mxu0 0.0
    %616 = vmatpush1.msra.mxu0 0.0
    %617 = vmatprep.subr.mxu0 0.0
    %618 = vmatpush1.msra.mxu0 0.0
    %619 = vmatprep.subr.mxu0 0.0
    %620 = vmatpush1.msra.mxu0 0.0
    %621 = vmatprep.subr.mxu0 0.0
    %622 = vmatpush1.msra.mxu0 0.0
    %623 = vmatprep.subr.mxu0 0.0
    %624 = vmatpush1.msra.mxu0 0.0
    %625 = vmatprep.subr.mxu0 0.0
    %626 = vmatpush1.msra.mxu0 0.0
    %627 = vmatprep.subr.mxu0 0.0
    %628 = vmatpush1.msra.mxu0 0.0
    %629 = vmatprep.subr.mxu0 0.0
    %630 = vmatpush1.msra.mxu0 0.0
    %631 = vmatprep.subr.mxu0 0.0
    %632 = vmatpush1.msra.mxu0 0.0
    %633 = vmatprep.subr.mxu0 0.0
    %634 = vmatpush1.msra.mxu0 0.0
    %635 = vmatprep.subr.mxu0 0.0
    %636 = vmatpush1.msra.mxu0 0.0
    %637 = vmatprep.subr.mxu0 0.0
    %638 = vmatpush1.msra.mxu0 0.0
    %639 = vmatprep.subr.mxu0 0.0
    %640 = vmatpush1.msra.mxu0 0.0
    %641 = vmatprep.subr.mxu0 0.0
    %642 = vmatpush1.msra.mxu0 0.0
    %643 = vmatprep.subr.mxu0 0.0
    %644 = vmatpush1.msra.mxu0 0.0
    %645 = vmatprep.subr.mxu0 0.0
    %646 = vmatpush1.msra.mxu0 0.0
    %647 = vmatprep.mubr.f32.mxu0 0.0
    %648 = vmatmul.mubr.f32.gmra.mrb[0].mxu0 %v557
    %v649 = vpop.f32.mrb[0].mxu0
    %v650 = vadd.f32 0.0, %v649
    %v651 = vpop.f32.mrb[0].mxu0
    %652 = vmatprep.mubr.f32.mxu0 0.0
    %653 = vmatmul.mubr.f32.gmra.mrb[0].mxu0 %v560
    %v654 = vpop.f32.mrb[0].mxu0
    %v655 = vadd.f32 0.0, %v654
    %v656 = vpop.f32.mrb[0].mxu0
    %657 = vmatprep.mubr.f32.mxu0 0.0
    %658 = vmatmul.mubr.f32.gmra.mrb[0].mxu0 %v563
    %v659 = vpop.f32.mrb[0].mxu0
    %v660 = vadd.f32 0.0, %v659
    %v661 = vpop.f32.mrb[0].mxu0
    %662 = vmatprep.mubr.f32.mxu0 0.0
    %663 = vmatmul.mubr.f32.gmra.mrb[0].mxu0 %v566
    %v664 = vpop.f32.mrb[0].mxu0
    %v665 = vadd.f32 0.0, %v664
    %v666 = vpop.f32.mrb[0].mxu0
    %667 = vmatprep.mubr.f32.mxu0 0.0
    %668 = vmatmul.mubr.f32.gmra.mrb[0].mxu0 %v569
    %v669 = vpop.f32.mrb[0].mxu0
    %v670 = vadd.f32 0.0, %v669
    %v671 = vpop.f32.mrb[0].mxu0
    %672 = vmatprep.mubr.f32.mxu0 0.0
    %673 = vmatmul.mubr.f32.gmra.mrb[0].mxu0 %v572
    %v674 = vpop.f32.mrb[0].mxu0
    %v675 = vadd.f32 0.0, %v674
    %v676 = vpop.f32.mrb[0].mxu0
    %677 = vmatprep.mubr.f32.mxu0 0.0
    %678 = vmatmul.mubr.f32.gmra.mrb[0].mxu0 %v575
    %v679 = vpop.f32.mrb[0].mxu0
    %v680 = vadd.f32 0.0, %v679
    %v681 = vpop.f32.mrb[0].mxu0
    %682 = vmatprep.mubr.f32.mxu0 0.0
    %683 = vmatmul.mubr.f32.gmra.mrb[0].mxu0 %v578
    %v684 = vpop.f32.mrb[0].mxu0
    %v685 = vadd.f32 0.0, %v684
    %v686 = vpop.f32.mrb[0].mxu0
    %687 = vmatprep.mubr.f32.mxu0 0.0
    %688 = vmatmul.mubr.f32.gmra.mrb[0].mxu0 %v581
    %v689 = vpop.f32.mrb[0].mxu0
    %v690 = vadd.f32 0.0, %v689
    %v691 = vpop.f32.mrb[0].mxu0
    %692 = vdwg.mxu0
    %696 = vrot.lane.b32.xlu0 %v665, 127
    %v697 = vpop.permute.xlu0 %696
    %698 = vrot.lane.b32.xlu0 %v670, 127
    %v699 = vpop.permute.xlu0 %698
    %700 = vrot.lane.b32.xlu0 %v675, 127
    %v701 = vpop.permute.xlu0 %700
    %v705 = vadd.f32 %v650, %v697
    %v706 = vadd.f32 %v655, %v699
    %v707 = vadd.f32 %v660, %v701
    %711 = vrot.lane.b32.xlu0 %v680, 126
    %v712 = vpop.permute.xlu0 %711
    %713 = vrot.lane.b32.xlu0 %v685, 126
    %v714 = vpop.permute.xlu0 %713
    %715 = vrot.lane.b32.xlu0 %v690, 126
    %v716 = vpop.permute.xlu0 %715
    %v720 = vadd.f32 %v705, %v712
    %v721 = vadd.f32 %v706, %v714
    %v722 = vadd.f32 %v707, %v716
    %724 = vset.pattern.permute.xlu0 0
    %725 = vperm.xlu0 %724, %v553
    %v726 = vpop.permute.xlu0 %725
    %729 = vset.pattern.permute.xlu0 0
    %730 = vperm.xlu0 %729, %v554
    %v731 = vpop.permute.xlu0 %730
    %734 = vset.pattern.permute.xlu0 0
    %735 = vperm.xlu0 %734, %v555
    %v736 = vpop.permute.xlu0 %735
    %v738 = vadd.f32 %v720, %v726
    %v739 = vadd.f32 %v721, %v731
    %v740 = vadd.f32 %v722, %v736
    %v741 = vmax.f32 %v738, 0.0
    %v742 = vmax.f32 %v739, 0.0
    %v743 = vmax.f32 %v740, 0.0
    %747 = vrot.lane.b32.xlu0 %v741, 127
    %v748 = vpop.permute.xlu0 %747
    %749 = vrot.lane.b32.xlu0 %v742, 127
    %v750 = vpop.permute.xlu0 %749
    %751 = vrot.lane.b32.xlu0 %v743, 127
    %v752 = vpop.permute.xlu0 %751
    %v756 = vmax.f32 %v741, %v748
    %v757 = vmax.f32 %v742, %v750
    %v758 = vmax.f32 %v743, %v752
    %759 = vst [vmem:[#allocation2] sm:$0xf] 0.0
    %vm760 = vcmask 90112
    %761 = vst.msk [vmem:[#allocation2] sm:$0x1] %vm760, %v756
    %v764 = vunpack.c.l.s4 1983009808
    %v765 = vunpack.c.0.s8 %v764
    %v766 = vlaneseq
    %v767 = vshrl.u32 %v766, 7
    %v768 = vsub.s32 %v765, %v767
    %v769 = vrot.slane %v756, %v768
    %v770 = vrot.slane %v769, 7
    %v771 = vrot.slane %v770, 2
    %772 = vrot.lane.b32.xlu0 %v771, 12
    %v773 = vpop.permute.xlu0 %772
    %vm775 = vcmask 188512
    %776 = vst.msk [vmem:[#allocation2] sm:$0x1] %vm775, %v773
    %v777 = vcombine.high %v769, %v769
    %778 = vrot.lane.b32.xlu0 %v777, 24
    %v779 = vpop.permute.xlu0 %778
    %vm781 = vcmask 286912
    %782 = vst.msk [vmem:[#allocation2] sm:$0x1] %vm781, %v779
    %v783 = vrot.slane %v777, 7
    %v784 = vrot.slane %v783, 2
    %785 = vrot.lane.b32.xlu0 %v784, 36
    %v786 = vpop.permute.xlu0 %785
    %vm788 = vcmask 385312
    %789 = vst.msk [vmem:[#allocation2] sm:$0x1] %vm788, %v786
    %v790 = vcombine.high %v756, %v756
    %v792 = vunpack.c.l.s4 1983009808
    %v793 = vunpack.c.0.s8 %v792
    %v794 = vlaneseq
    %v795 = vshrl.u32 %v794, 7
    %v796 = vsub.s32 %v793, %v795
    %v797 = vrot.slane %v790, %v796
    %798 = vrot.lane.b32.xlu0 %v797, 48
    %v799 = vpop.permute.xlu0 %798
    %vm801 = vcmask 483712
    %802 = vst.msk [vmem:[#allocation2] sm:$0x1] %vm801, %v799
    %v803 = vrot.slane %v797, 7
    %v804 = vrot.slane %v803, 2
    %805 = vrot.lane.b32.xlu0 %v804, 60
    %v806 = vpop.permute.xlu0 %805
    %vm808 = vcmask 582112
    %809 = vst.msk [vmem:[#allocation2] sm:$0x1] %vm808, %v806
    %v810 = vcombine.high %v797, %v797
    %811 = vrot.lane.b32.xlu0 %v810, 72
    %v812 = vpop.permute.xlu0 %811
    %vm814 = vcmask 680512
    %815 = vst.msk [vmem:[#allocation2] sm:$0x1] %vm814, %v812
    %v816 = vrot.slane %v810, 7
    %v817 = vrot.slane %v816, 2
    %818 = vrot.lane.b32.xlu0 %v817, 84
    %v819 = vpop.permute.xlu0 %818
    %vm821 = vcmask 778912
    %822 = vst.msk [vmem:[#allocation2] sm:$0x1] %vm821, %v819
    %v825 = vunpack.c.l.s4 1983009808
    %v826 = vunpack.c.0.s8 %v825
    %v827 = vlaneseq
    %v828 = vshrl.u32 %v827, 7
    %v829 = vsub.s32 %v826, %v828
    %v830 = vrot.slane %v757, %v829
    %831 = vrot.lane.b32.xlu0 %v830, 96
    %v832 = vpop.permute.xlu0 %831
    %vm834 = vcmask 877312
    %835 = vst.msk [vmem:[#allocation2] sm:$0x1] %vm834, %v832
    %v836 = vrot.slane %v830, 7
    %v837 = vrot.slane %v836, 2
    %838 = vrot.lane.b32.xlu0 %v837, 108
    %v839 = vpop.permute.xlu0 %838
    %vm841 = vcmask 975712
    %842 = vst.msk [vmem:[#allocation2] sm:$0x1] %vm841, %v839
    %v843 = vcombine.high %v830, %v830
    %844 = vrot.lane.b32.xlu0 %v843, 120
    %v845 = vpop.permute.xlu0 %844
    %v846 = vrot.slane %v845, 6
    %vm847 = vcmask 982016
    %v848 = vsel %vm847, %v846, %v845
    %vm850 = vcmask 1041344
    %vm851 = vcmask 26626
    %vm852 = vmor %vm851, %vm850
    %853 = vst.msk [vmem:[#allocation2] sm:$0x5] %vm852, %v848
    %v854 = vrot.slane %v843, 7
    %v855 = vrot.slane %v854, 2
    %856 = vrot.lane.b32.xlu0 %v855, 4
    %v857 = vpop.permute.xlu0 %856
    %vm859 = vcmask 122912
    %860 = vst.msk [vmem:[#allocation2 + $0x2] sm:$0x1] %vm859, %v857
    %v861 = vcombine.high %v757, %v757
    %v863 = vunpack.c.l.s4 1983009808
    %v864 = vunpack.c.0.s8 %v863
    %v865 = vlaneseq
    %v866 = vshrl.u32 %v865, 7
    %v867 = vsub.s32 %v864, %v866
    %v868 = vrot.slane %v861, %v867
    %869 = vrot.lane.b32.xlu0 %v868, 16
    %v870 = vpop.permute.xlu0 %869
    %vm872 = vcmask 221312
    %873 = vst.msk [vmem:[#allocation2 + $0x2] sm:$0x1] %vm872, %v870
    %v874 = vrot.slane %v868, 7
    %v875 = vrot.slane %v874, 2
    %876 = vrot.lane.b32.xlu0 %v875, 28
    %v877 = vpop.permute.xlu0 %876
    %vm879 = vcmask 319712
    %880 = vst.msk [vmem:[#allocation2 + $0x2] sm:$0x1] %vm879, %v877
    %v881 = vcombine.high %v868, %v868
    %882 = vrot.lane.b32.xlu0 %v881, 40
    %v883 = vpop.permute.xlu0 %882
    %vm885 = vcmask 418112
    %886 = vst.msk [vmem:[#allocation2 + $0x2] sm:$0x1] %vm885, %v883
    %v887 = vrot.slane %v881, 7
    %v888 = vrot.slane %v887, 2
    %889 = vrot.lane.b32.xlu0 %v888, 52
    %v890 = vpop.permute.xlu0 %889
    %vm892 = vcmask 516512
    %893 = vst.msk [vmem:[#allocation2 + $0x2] sm:$0x1] %vm892, %v890
    %v896 = vunpack.c.l.s4 1983009808
    %v897 = vunpack.c.0.s8 %v896
    %v898 = vlaneseq
    %v899 = vshrl.u32 %v898, 7
    %v900 = vsub.s32 %v897, %v899
    %v901 = vrot.slane %v758, %v900
    %902 = vrot.lane.b32.xlu0 %v901, 64
    %v903 = vpop.permute.xlu0 %902
    %vm905 = vcmask 614912
    %906 = vst.msk [vmem:[#allocation2 + $0x2] sm:$0x1] %vm905, %v903
    %v907 = vrot.slane %v901, 7
    %v908 = vrot.slane %v907, 2
    %909 = vrot.lane.b32.xlu0 %v908, 76
    %v910 = vpop.permute.xlu0 %909
    %vm912 = vcmask 713312
    %913 = vst.msk [vmem:[#allocation2 + $0x2] sm:$0x1] %vm912, %v910
    %v914 = vcombine.high %v901, %v901
    %915 = vrot.lane.b32.xlu0 %v914, 88
    %v916 = vpop.permute.xlu0 %915
    %vm918 = vcmask 811712
    %919 = vst.msk [vmem:[#allocation2 + $0x2] sm:$0x1] %vm918, %v916
    %v920 = vrot.slane %v914, 7
    %v921 = vrot.slane %v920, 2
    %922 = vrot.lane.b32.xlu0 %v921, 100
    %v923 = vpop.permute.xlu0 %922
    %vm925 = vcmask 910112
    %926 = vst.msk [vmem:[#allocation2 + $0x2] sm:$0x1] %vm925, %v923
    %927 = vrot.lane.b32.xlu0 %v769, 104
    %v928 = vpop.permute.xlu0 %927
    %930 = vst.msk [vmem:[#allocation2 + $0x1] sm:$0x1] %vm760, %v928
    %931 = vrot.lane.b32.xlu0 %v771, 116
    %v932 = vpop.permute.xlu0 %931
    %934 = vst.msk [vmem:[#allocation2 + $0x1] sm:$0x1] %vm775, %v932
    %936 = vst.msk [vmem:[#allocation2 + $0x1] sm:$0x1] %vm781, %v777
    %937 = vrot.lane.b32.xlu0 %v784, 12
    %v938 = vpop.permute.xlu0 %937
    %940 = vst.msk [vmem:[#allocation2 + $0x1] sm:$0x1] %vm788, %v938
    %941 = vrot.lane.b32.xlu0 %v797, 24
    %v942 = vpop.permute.xlu0 %941
    %944 = vst.msk [vmem:[#allocation2 + $0x1] sm:$0x1] %vm801, %v942
    %945 = vrot.lane.b32.xlu0 %v804, 36
    %v946 = vpop.permute.xlu0 %945
    %948 = vst.msk [vmem:[#allocation2 + $0x1] sm:$0x1] %vm808, %v946
    %949 = vrot.lane.b32.xlu0 %v810, 48
    %v950 = vpop.permute.xlu0 %949
    %952 = vst.msk [vmem:[#allocation2 + $0x1] sm:$0x1] %vm814, %v950
    %953 = vrot.lane.b32.xlu0 %v817, 60
    %v954 = vpop.permute.xlu0 %953
    %956 = vst.msk [vmem:[#allocation2 + $0x1] sm:$0x1] %vm821, %v954
    %957 = vrot.lane.b32.xlu0 %v830, 72
    %v958 = vpop.permute.xlu0 %957
    %960 = vst.msk [vmem:[#allocation2 + $0x1] sm:$0x1] %vm834, %v958
    %961 = vrot.lane.b32.xlu0 %v837, 84
    %v962 = vpop.permute.xlu0 %961
    %964 = vst.msk [vmem:[#allocation2 + $0x1] sm:$0x1] %vm841, %v962
    %965 = vrot.lane.b32.xlu0 %v843, 96
    %v966 = vpop.permute.xlu0 %965
    %v967 = vrot.slane %v966, 6
    %vm968 = vcmask 785408
    %v969 = vsel %vm968, %v967, %v966
    %971 = vst.msk [vmem:[#allocation2 + $0x1] sm:$0x5] %vm852, %v969
    %972 = vrot.lane.b32.xlu0 %v855, 108
    %v973 = vpop.permute.xlu0 %972
    %975 = vst.msk [vmem:[#allocation2 + $0x3] sm:$0x1] %vm859, %v973
    %976 = vrot.lane.b32.xlu0 %v868, 120
    %v977 = vpop.permute.xlu0 %976
    %979 = vst.msk [vmem:[#allocation2 + $0x3] sm:$0x1] %vm872, %v977
    %980 = vrot.lane.b32.xlu0 %v875, 4
    %v981 = vpop.permute.xlu0 %980
    %983 = vst.msk [vmem:[#allocation2 + $0x3] sm:$0x1] %vm879, %v981
    %984 = vrot.lane.b32.xlu0 %v881, 16
    %v985 = vpop.permute.xlu0 %984
    %987 = vst.msk [vmem:[#allocation2 + $0x3] sm:$0x1] %vm885, %v985
    %988 = vrot.lane.b32.xlu0 %v888, 28
    %v989 = vpop.permute.xlu0 %988
    %991 = vst.msk [vmem:[#allocation2 + $0x3] sm:$0x1] %vm892, %v989
    %992 = vrot.lane.b32.xlu0 %v901, 40
    %v993 = vpop.permute.xlu0 %992
    %995 = vst.msk [vmem:[#allocation2 + $0x3] sm:$0x1] %vm905, %v993
    %996 = vrot.lane.b32.xlu0 %v908, 52
    %v997 = vpop.permute.xlu0 %996
    %999 = vst.msk [vmem:[#allocation2 + $0x3] sm:$0x1] %vm912, %v997
    %1000 = vrot.lane.b32.xlu0 %v914, 64
    %v1001 = vpop.permute.xlu0 %1000
    %1003 = vst.msk [vmem:[#allocation2 + $0x3] sm:$0x1] %vm918, %v1001
    %1004 = vrot.lane.b32.xlu0 %v921, 76
    %v1005 = vpop.permute.xlu0 %1004
    %1007 = vst.msk [vmem:[#allocation2 + $0x3] sm:$0x1] %vm925, %v1005
    %v1008 = vld [vmem:[#allocation2] sm:$0xf]
    %v1009 = vld [vmem:[#allocation3] sm:$0xff]
    %v1010 = vld [vmem:[#allocation3 + $0x8] sm:$0xff]
    %v1011 = vld [vmem:[#allocation3 + $0x10] sm:$0xff]
    %v1012 = vld [vmem:[#allocation3 + $0x18] sm:$0xff]
    %v1013 = vld [vmem:[#allocation3 + $0x20] sm:$0xff]
    %v1014 = vld [vmem:[#allocation3 + $0x28] sm:$0xff]
    %v1015 = vld [vmem:[#allocation3 + $0x30] sm:$0xff]
    %v1016 = vld [vmem:[#allocation3 + $0x38] sm:$0xff]
    %v1017 = vld [vmem:[#allocation3 + $0x40] sm:$0xff]
    %v1018 = vld [vmem:[#allocation3 + $0x48] sm:$0xff]
    %v1019 = vld [vmem:[#allocation3 + $0x50] sm:$0xff]
    %v1020 = vld [vmem:[#allocation3 + $0x58] sm:$0xff]
    %v1021 = vld [vmem:[#allocation3 + $0x60] sm:$0xff]
    %v1022 = vld [vmem:[#allocation3 + $0x68] sm:$0xff]
    %v1023 = vld [vmem:[#allocation3 + $0x70] sm:$0xff]
    %v1024 = vld [vmem:[#allocation3 + $0x78] sm:$0xff]
    %v1025 = vld [vmem:[#allocation3 + $0x80] sm:$0xff]
    %v1026 = vld [vmem:[#allocation3 + $0x88] sm:$0xff]
    %v1027 = vld [vmem:[#allocation3 + $0x90] sm:$0xff]
    %v1028 = vld [vmem:[#allocation3 + $0x98] sm:$0xff]
    %v1029 = vld [vmem:[#allocation3 + $0xa0] sm:$0xff]
    %v1030 = vld [vmem:[#allocation3 + $0xa8] sm:$0xff]
    %v1031 = vld [vmem:[#allocation3 + $0xb0] sm:$0xff]
    %v1032 = vld [vmem:[#allocation3 + $0xb8] sm:$0xff]
    %v1033 = vld [vmem:[#allocation3 + $0xc0] sm:$0xff]
    %v1034 = vld [vmem:[#allocation3 + $0xc8] sm:$0xff]
    %v1035 = vld [vmem:[#allocation3 + $0xd0] sm:$0xff]
    %v1036 = vld [vmem:[#allocation3 + $0xd8] sm:$0xff]
    %v1037 = vld [vmem:[#allocation3 + $0xe0] sm:$0xff]
    %v1038 = vld [vmem:[#allocation3 + $0xe8] sm:$0xff]
    %v1039 = vld [vmem:[#allocation3 + $0xf0] sm:$0xff]
    %v1040 = vld [vmem:[#allocation3 + $0xf8] sm:$0xff]
    %v1041 = vld [vmem:[#allocation3 + $0x100] sm:$0xff]
    %v1042 = vld [vmem:[#allocation3 + $0x108] sm:$0xff]
    %v1043 = vld [vmem:[#allocation3 + $0x110] sm:$0xff]
    %v1044 = vld [vmem:[#allocation3 + $0x118] sm:$0xff]
    %v1045 = vld [vmem:[#allocation3 + $0x120] sm:$0xff]
    %v1046 = vld [vmem:[#allocation3 + $0x128] sm:$0xff]
    %v1047 = vld [vmem:[#allocation3 + $0x130] sm:$0xff]
    %v1048 = vld [vmem:[#allocation3 + $0x138] sm:$0xff]
    %v1049 = vld [vmem:[#allocation3 + $0x140] sm:$0xff]
    %v1050 = vld [vmem:[#allocation3 + $0x148] sm:$0xff]
    %v1051 = vld [vmem:[#allocation3 + $0x150] sm:$0xff]
    %v1052 = vld [vmem:[#allocation3 + $0x158] sm:$0xff]
    %v1053 = vld [vmem:[#allocation3 + $0x160] sm:$0xff]
    %v1054 = vld [vmem:[#allocation3 + $0x168] sm:$0xff]
    %v1055 = vld [vmem:[#allocation3 + $0x170] sm:$0xff]
    %v1056 = vld [vmem:[#allocation3 + $0x178] sm:$0xff]
    %v1057 = vld [vmem:[#allocation3 + $0x180] sm:$0xff]
    %v1058 = vld [vmem:[#allocation3 + $0x188] sm:$0xff]
    %v1059 = vld [vmem:[#allocation3 + $0x190] sm:$0xff]
    %v1060 = vld [vmem:[#allocation3 + $0x198] sm:$0xff]
    %v1061 = vld [vmem:[#allocation3 + $0x1a0] sm:$0xff]
    %v1062 = vld [vmem:[#allocation3 + $0x1a8] sm:$0xff]
    %v1063 = vld [vmem:[#allocation3 + $0x1b0] sm:$0xff]
    %v1064 = vld [vmem:[#allocation3 + $0x1b8] sm:$0xff]
    %v1065 = vld [vmem:[#allocation3 + $0x1c0] sm:$0xff]
    %v1066 = vld [vmem:[#allocation3 + $0x1c8] sm:$0xff]
    %v1067 = vld [vmem:[#allocation3 + $0x1d0] sm:$0xff]
    %v1068 = vld [vmem:[#allocation3 + $0x1d8] sm:$0xff]
    %v1069 = vld [vmem:[#allocation3 + $0x1e0] sm:$0xff]
    %v1070 = vld [vmem:[#allocation3 + $0x1e8] sm:$0xff]
    %v1071 = vld [vmem:[#allocation3 + $0x1f0] sm:$0xff]
    %v1072 = vld [vmem:[#allocation3 + $0x1f8] sm:$0xff]
    %v1075 = vunpack.c.l.s4 1983009808
    %v1076 = vunpack.c.0.s8 %v1075
    %v1077 = vlaneseq
    %v1078 = vshrl.u32 %v1077, 7
    %v1079 = vsub.s32 %v1076, %v1078
    %v1080 = vrot.slane %v1008, %v1079
    %v1081 = vcombine.high %v1080, %v1080
    %1084 = vmatprep.subr.mxu0 %v1010
    %1085 = vmatpush1.msra.mxu0 %v1009
    %1086 = vmatprep.subr.mxu0 %v1012
    %1087 = vmatpush1.msra.mxu0 %v1011
    %1088 = vmatprep.subr.mxu0 %v1014
    %1089 = vmatpush1.msra.mxu0 %v1013
    %1090 = vmatprep.subr.mxu0 %v1016
    %1091 = vmatpush1.msra.mxu0 %v1015
    %1092 = vmatprep.subr.mxu0 %v1018
    %1093 = vmatpush1.msra.mxu0 %v1017
    %1094 = vmatprep.subr.mxu0 %v1020
    %1095 = vmatpush1.msra.mxu0 %v1019
    %1096 = vmatprep.subr.mxu0 %v1022
    %1097 = vmatpush1.msra.mxu0 %v1021
    %1098 = vmatprep.subr.mxu0 %v1024
    %1099 = vmatpush1.msra.mxu0 %v1023
    %1100 = vmatprep.subr.mxu0 %v1026
    %1101 = vmatpush1.msra.mxu0 %v1025
    %1102 = vmatprep.subr.mxu0 %v1028
    %1103 = vmatpush1.msra.mxu0 %v1027
    %1104 = vmatprep.subr.mxu0 %v1030
    %1105 = vmatpush1.msra.mxu0 %v1029
    %1106 = vmatprep.subr.mxu0 %v1032
    %1107 = vmatpush1.msra.mxu0 %v1031
    %1108 = vmatprep.subr.mxu0 %v1034
    %1109 = vmatpush1.msra.mxu0 %v1033
    %1110 = vmatprep.subr.mxu0 %v1036
    %1111 = vmatpush1.msra.mxu0 %v1035
    %1112 = vmatprep.subr.mxu0 %v1038
    %1113 = vmatpush1.msra.mxu0 %v1037
    %1114 = vmatprep.subr.mxu0 %v1040
    %1115 = vmatpush1.msra.mxu0 %v1039
    %1116 = vmatprep.subr.mxu0 %v1042
    %1117 = vmatpush1.msra.mxu0 %v1041
    %1118 = vmatprep.subr.mxu0 %v1044
    %1119 = vmatpush1.msra.mxu0 %v1043
    %1120 = vmatprep.subr.mxu0 %v1046
    %1121 = vmatpush1.msra.mxu0 %v1045
    %1122 = vmatprep.subr.mxu0 %v1048
    %1123 = vmatpush1.msra.mxu0 %v1047
    %1124 = vmatprep.subr.mxu0 %v1050
    %1125 = vmatpush1.msra.mxu0 %v1049
    %1126 = vmatprep.subr.mxu0 %v1052
    %1127 = vmatpush1.msra.mxu0 %v1051
    %1128 = vmatprep.subr.mxu0 %v1054
    %1129 = vmatpush1.msra.mxu0 %v1053
    %1130 = vmatprep.subr.mxu0 %v1056
    %1131 = vmatpush1.msra.mxu0 %v1055
    %1132 = vmatprep.subr.mxu0 %v1058
    %1133 = vmatpush1.msra.mxu0 %v1057
    %1134 = vmatprep.subr.mxu0 %v1060
    %1135 = vmatpush1.msra.mxu0 %v1059
    %1136 = vmatprep.subr.mxu0 %v1062
    %1137 = vmatpush1.msra.mxu0 %v1061
    %1138 = vmatprep.subr.mxu0 %v1064
    %1139 = vmatpush1.msra.mxu0 %v1063
    %1140 = vmatprep.subr.mxu0 %v1066
    %1141 = vmatpush1.msra.mxu0 %v1065
    %1142 = vmatprep.subr.mxu0 %v1068
    %1143 = vmatpush1.msra.mxu0 %v1067
    %1144 = vmatprep.subr.mxu0 %v1070
    %1145 = vmatpush1.msra.mxu0 %v1069
    %1146 = vmatprep.subr.mxu0 %v1072
    %1147 = vmatpush1.msra.mxu0 %v1071
    %1148 = vmatprep.mubr.f32.mxu0 %v1081
    %1149 = vmatmul.mubr.f32.gmra.mrb[0].mxu0 %v1080
    %v1150 = vpop.f32.mrb[0].mxu0
    %v1151 = vadd.f32 0.0, %v1150
    %v1152 = vpop.f32.mrb[0].mxu0
    %v1153 = vadd.f32 0.0, %v1152
    %1154 = vdwg.mxu0
    %v1156 = vrot.slane %v1151, 1
    %v1158 = vsub.f32 %v1151, %v1156
    %v1159 = vand.u32 2147483647, %v1158
    %v1160 = vld [vmem:[#allocation6] sm:$0xff]
    %v1161 = vld [vmem:[#allocation6 + $0x8] sm:$0xff]
    %v1162 = vld [vmem:[#allocation6 + $0x10] sm:$0xff]
    %v1163 = vld [vmem:[#allocation6 + $0x18] sm:$0xff]
    %v1164 = vld [vmem:[#allocation6 + $0x20] sm:$0xff]
    %v1165 = vld [vmem:[#allocation6 + $0x28] sm:$0xff]
    %v1166 = vld [vmem:[#allocation6 + $0x30] sm:$0xff]
    %v1167 = vld [vmem:[#allocation6 + $0x38] sm:$0xff]
    %v1168 = vld [vmem:[#allocation6 + $0x40] sm:$0xff]
    %v1169 = vld [vmem:[#allocation6 + $0x48] sm:$0xff]
    %v1170 = vld [vmem:[#allocation6 + $0x50] sm:$0xff]
    %v1171 = vld [vmem:[#allocation6 + $0x58] sm:$0xff]
    %v1172 = vld [vmem:[#allocation6 + $0x60] sm:$0xff]
    %v1173 = vld [vmem:[#allocation6 + $0x68] sm:$0xff]
    %v1174 = vld [vmem:[#allocation6 + $0x70] sm:$0xff]
    %v1175 = vld [vmem:[#allocation6 + $0x78] sm:$0xff]
    %1176 = vmatprep.subr.mxu0 0.0
    %1177 = vmatpush1.msra.mxu0 %v1160
    %1178 = vmatprep.subr.mxu0 0.0
    %1179 = vmatpush1.msra.mxu0 %v1161
    %1180 = vmatprep.subr.mxu0 0.0
    %1181 = vmatpush1.msra.mxu0 %v1162
    %1182 = vmatprep.subr.mxu0 0.0
    %1183 = vmatpush1.msra.mxu0 %v1163
    %1184 = vmatprep.subr.mxu0 0.0
    %1185 = vmatpush1.msra.mxu0 %v1164
    %1186 = vmatprep.subr.mxu0 0.0
    %1187 = vmatpush1.msra.mxu0 %v1165
    %1188 = vmatprep.subr.mxu0 0.0
    %1189 = vmatpush1.msra.mxu0 %v1166
    %1190 = vmatprep.subr.mxu0 0.0
    %1191 = vmatpush1.msra.mxu0 %v1167
    %1192 = vmatprep.subr.mxu0 0.0
    %1193 = vmatpush1.msra.mxu0 %v1168
    %1194 = vmatprep.subr.mxu0 0.0
    %1195 = vmatpush1.msra.mxu0 %v1169
    %1196 = vmatprep.subr.mxu0 0.0
    %1197 = vmatpush1.msra.mxu0 %v1170
    %1198 = vmatprep.subr.mxu0 0.0
    %1199 = vmatpush1.msra.mxu0 %v1171
    %1200 = vmatprep.subr.mxu0 0.0
    %1201 = vmatpush1.msra.mxu0 %v1172
    %1202 = vmatprep.subr.mxu0 0.0
    %1203 = vmatpush1.msra.mxu0 %v1173
    %1204 = vmatprep.subr.mxu0 0.0
    %1205 = vmatpush1.msra.mxu0 %v1174
    %1206 = vmatprep.subr.mxu0 0.0
    %1207 = vmatpush1.msra.mxu0 %v1175
    %1208 = vmatprep.subr.mxu0 0.0
    %1209 = vmatpush1.msra.mxu0 0.0
    %1210 = vmatprep.subr.mxu0 0.0
    %1211 = vmatpush1.msra.mxu0 0.0
    %1212 = vmatprep.subr.mxu0 0.0
    %1213 = vmatpush1.msra.mxu0 0.0
    %1214 = vmatprep.subr.mxu0 0.0
    %1215 = vmatpush1.msra.mxu0 0.0
    %1216 = vmatprep.subr.mxu0 0.0
    %1217 = vmatpush1.msra.mxu0 0.0
    %1218 = vmatprep.subr.mxu0 0.0
    %1219 = vmatpush1.msra.mxu0 0.0
    %1220 = vmatprep.subr.mxu0 0.0
    %1221 = vmatpush1.msra.mxu0 0.0
    %1222 = vmatprep.subr.mxu0 0.0
    %1223 = vmatpush1.msra.mxu0 0.0
    %1224 = vmatprep.subr.mxu0 0.0
    %1225 = vmatpush1.msra.mxu0 0.0
    %1226 = vmatprep.subr.mxu0 0.0
    %1227 = vmatpush1.msra.mxu0 0.0
    %1228 = vmatprep.subr.mxu0 0.0
    %1229 = vmatpush1.msra.mxu0 0.0
    %1230 = vmatprep.subr.mxu0 0.0
    %1231 = vmatpush1.msra.mxu0 0.0
    %1232 = vmatprep.subr.mxu0 0.0
    %1233 = vmatpush1.msra.mxu0 0.0
    %1234 = vmatprep.subr.mxu0 0.0
    %1235 = vmatpush1.msra.mxu0 0.0
    %1236 = vmatprep.subr.mxu0 0.0
    %1237 = vmatpush1.msra.mxu0 0.0
    %1238 = vmatprep.subr.mxu0 0.0
    %1239 = vmatpush1.msra.mxu0 0.0
    %1240 = vmatprep.mubr.f32.mxu0 0.0
    %1241 = vmatmul.mubr.f32.gmra.mrb[0].mxu0 %v1159
    %v1242 = vpop.f32.mrb[0].mxu0
    %v1243 = vadd.f32 0.0, %v1242
    %v1244 = vpop.f32.mrb[0].mxu0
    %1245 = vdwg.mxu0
    %v1246 = vsub.f32 0.0, %v1243
    %v1247 = vmul.f32 %v1246, 1.442695
    %v1248 = vpow.pop %v1247
    %v1249 = vld [vmem:[#allocation6 + $0x80] sm:$0xff]
    %v1250 = vld [vmem:[#allocation6 + $0x88] sm:$0xff]
    %v1251 = vld [vmem:[#allocation6 + $0x90] sm:$0xff]
    %v1252 = vld [vmem:[#allocation6 + $0x98] sm:$0xff]
    %v1253 = vld [vmem:[#allocation6 + $0xa0] sm:$0xff]
    %v1254 = vld [vmem:[#allocation6 + $0xa8] sm:$0xff]
    %v1255 = vld [vmem:[#allocation6 + $0xb0] sm:$0xff]
    %v1256 = vld [vmem:[#allocation6 + $0xb8] sm:$0xff]
    %v1257 = vld [vmem:[#allocation6 + $0xc0] sm:$0xff]
    %v1258 = vld [vmem:[#allocation6 + $0xc8] sm:$0xff]
    %v1259 = vld [vmem:[#allocation6 + $0xd0] sm:$0xff]
    %v1260 = vld [vmem:[#allocation6 + $0xd8] sm:$0xff]
    %v1261 = vld [vmem:[#allocation6 + $0xe0] sm:$0xff]
    %v1262 = vld [vmem:[#allocation6 + $0xe8] sm:$0xff]
    %v1263 = vld [vmem:[#allocation6 + $0xf0] sm:$0xff]
    %v1264 = vld [vmem:[#allocation6 + $0xf8] sm:$0xff]
    %1265 = vmatprep.subr.mxu0 0.0
    %1266 = vmatpush1.msra.mxu0 %v1249
    %1267 = vmatprep.subr.mxu0 0.0
    %1268 = vmatpush1.msra.mxu0 %v1250
    %1269 = vmatprep.subr.mxu0 0.0
    %1270 = vmatpush1.msra.mxu0 %v1251
    %1271 = vmatprep.subr.mxu0 0.0
    %1272 = vmatpush1.msra.mxu0 %v1252
    %1273 = vmatprep.subr.mxu0 0.0
    %1274 = vmatpush1.msra.mxu0 %v1253
    %1275 = vmatprep.subr.mxu0 0.0
    %1276 = vmatpush1.msra.mxu0 %v1254
    %1277 = vmatprep.subr.mxu0 0.0
    %1278 = vmatpush1.msra.mxu0 %v1255
    %1279 = vmatprep.subr.mxu0 0.0
    %1280 = vmatpush1.msra.mxu0 %v1256
    %1281 = vmatprep.subr.mxu0 0.0
    %1282 = vmatpush1.msra.mxu0 %v1257
    %1283 = vmatprep.subr.mxu0 0.0
    %1284 = vmatpush1.msra.mxu0 %v1258
    %1285 = vmatprep.subr.mxu0 0.0
    %1286 = vmatpush1.msra.mxu0 %v1259
    %1287 = vmatprep.subr.mxu0 0.0
    %1288 = vmatpush1.msra.mxu0 %v1260
    %1289 = vmatprep.subr.mxu0 0.0
    %1290 = vmatpush1.msra.mxu0 %v1261
    %1291 = vmatprep.subr.mxu0 0.0
    %1292 = vmatpush1.msra.mxu0 %v1262
    %1293 = vmatprep.subr.mxu0 0.0
    %1294 = vmatpush1.msra.mxu0 %v1263
    %1295 = vmatprep.subr.mxu0 0.0
    %1296 = vmatpush1.msra.mxu0 %v1264
    %1297 = vmatprep.subr.mxu0 0.0
    %1298 = vmatpush1.msra.mxu0 0.0
    %1299 = vmatprep.subr.mxu0 0.0
    %1300 = vmatpush1.msra.mxu0 0.0
    %1301 = vmatprep.subr.mxu0 0.0
    %1302 = vmatpush1.msra.mxu0 0.0
    %1303 = vmatprep.subr.mxu0 0.0
    %1304 = vmatpush1.msra.mxu0 0.0
    %1305 = vmatprep.subr.mxu0 0.0
    %1306 = vmatpush1.msra.mxu0 0.0
    %1307 = vmatprep.subr.mxu0 0.0
    %1308 = vmatpush1.msra.mxu0 0.0
    %1309 = vmatprep.subr.mxu0 0.0
    %1310 = vmatpush1.msra.mxu0 0.0
    %1311 = vmatprep.subr.mxu0 0.0
    %1312 = vmatpush1.msra.mxu0 0.0
    %1313 = vmatprep.subr.mxu0 0.0
    %1314 = vmatpush1.msra.mxu0 0.0
    %1315 = vmatprep.subr.mxu0 0.0
    %1316 = vmatpush1.msra.mxu0 0.0
    %1317 = vmatprep.subr.mxu0 0.0
    %1318 = vmatpush1.msra.mxu0 0.0
    %1319 = vmatprep.subr.mxu0 0.0
    %1320 = vmatpush1.msra.mxu0 0.0
    %1321 = vmatprep.subr.mxu0 0.0
    %1322 = vmatpush1.msra.mxu0 0.0
    %1323 = vmatprep.subr.mxu0 0.0
    %1324 = vmatpush1.msra.mxu0 0.0
    %1325 = vmatprep.subr.mxu0 0.0
    %1326 = vmatpush1.msra.mxu0 0.0
    %1327 = vmatprep.subr.mxu0 0.0
    %1328 = vmatpush1.msra.mxu0 0.0
    %1329 = vmatprep.mubr.f32.mxu0 0.0
    %1330 = vmatmul.mubr.f32.gmra.mrb[0].mxu0 %v1248
    %v1331 = vpop.f32.mrb[0].mxu0
    %v1332 = vadd.f32 0.0, %v1331
    %v1333 = vpop.f32.mrb[0].mxu0
    %1334 = vdwg.mxu0
    %v1335 = vld [vmem:[#allocation6 + $0x200] sm:$0xff]
    %v1336 = vlaneseq
    %v1337 = vshrl.u32 %v1336, 7
    %v1338 = vsub.s32 0, %v1337
    %v1339 = vrot.slane %v1332, %v1338
    %v1340 = vadd.f32 %v1153, %v1339
    %v1341 = vlaneseq
    %v1342 = vshrl.u32 %v1341, 7
    %v1343 = vsub.s32 0, %v1342
    %v1344 = vrot.slane %v1335, %v1343
    %v1345 = vadd.f32 %v1340, %v1344
    %v1346 = vld [vmem:[#allocation6 + $0x100] sm:$0xff]
    %v1347 = vld [vmem:[#allocation6 + $0x108] sm:$0xff]
    %v1348 = vld [vmem:[#allocation6 + $0x110] sm:$0xff]
    %v1349 = vld [vmem:[#allocation6 + $0x118] sm:$0xff]
    %v1350 = vld [vmem:[#allocation6 + $0x120] sm:$0xff]
    %v1351 = vld [vmem:[#allocation6 + $0x128] sm:$0xff]
    %v1352 = vld [vmem:[#allocation6 + $0x130] sm:$0xff]
    %v1353 = vld [vmem:[#allocation6 + $0x138] sm:$0xff]
    %v1354 = vld [vmem:[#allocation6 + $0x140] sm:$0xff]
    %v1355 = vld [vmem:[#allocation6 + $0x148] sm:$0xff]
    %v1356 = vld [vmem:[#allocation6 + $0x150] sm:$0xff]
    %v1357 = vld [vmem:[#allocation6 + $0x158] sm:$0xff]
    %v1358 = vld [vmem:[#allocation6 + $0x160] sm:$0xff]
    %v1359 = vld [vmem:[#allocation6 + $0x168] sm:$0xff]
    %v1360 = vld [vmem:[#allocation6 + $0x170] sm:$0xff]
    %v1361 = vld [vmem:[#allocation6 + $0x178] sm:$0xff]
    %v1362 = vlaneseq
    %v1363 = vshrl.u32 %v1362, 7
    %v1364 = vsub.s32 1, %v1363
    %v1365 = vrot.slane %v1335, %v1364
    %1366 = vmatprep.subr.mxu0 0.0
    %1367 = vmatpush1.msra.mxu0 %v1346
    %1368 = vmatprep.subr.mxu0 0.0
    %1369 = vmatpush1.msra.mxu0 %v1347
    %1370 = vmatprep.subr.mxu0 0.0
    %1371 = vmatpush1.msra.mxu0 %v1348
    %1372 = vmatprep.subr.mxu0 0.0
    %1373 = vmatpush1.msra.mxu0 %v1349
    %1374 = vmatprep.subr.mxu0 0.0
    %1375 = vmatpush1.msra.mxu0 %v1350
    %1376 = vmatprep.subr.mxu0 0.0
    %1377 = vmatpush1.msra.mxu0 %v1351
    %1378 = vmatprep.subr.mxu0 0.0
    %1379 = vmatpush1.msra.mxu0 %v1352
    %1380 = vmatprep.subr.mxu0 0.0
    %1381 = vmatpush1.msra.mxu0 %v1353
    %1382 = vmatprep.subr.mxu0 0.0
    %1383 = vmatpush1.msra.mxu0 %v1354
    %1384 = vmatprep.subr.mxu0 0.0
    %1385 = vmatpush1.msra.mxu0 %v1355
    %1386 = vmatprep.subr.mxu0 0.0
    %1387 = vmatpush1.msra.mxu0 %v1356
    %1388 = vmatprep.subr.mxu0 0.0
    %1389 = vmatpush1.msra.mxu0 %v1357
    %1390 = vmatprep.subr.mxu0 0.0
    %1391 = vmatpush1.msra.mxu0 %v1358
    %1392 = vmatprep.subr.mxu0 0.0
    %1393 = vmatpush1.msra.mxu0 %v1359
    %1394 = vmatprep.subr.mxu0 0.0
    %1395 = vmatpush1.msra.mxu0 %v1360
    %1396 = vmatprep.subr.mxu0 0.0
    %1397 = vmatpush1.msra.mxu0 %v1361
    %1398 = vmatprep.subr.mxu0 0.0
    %1399 = vmatpush1.msra.mxu0 0.0
    %1400 = vmatprep.subr.mxu0 0.0
    %1401 = vmatpush1.msra.mxu0 0.0
    %1402 = vmatprep.subr.mxu0 0.0
    %1403 = vmatpush1.msra.mxu0 0.0
    %1404 = vmatprep.subr.mxu0 0.0
    %1405 = vmatpush1.msra.mxu0 0.0
    %1406 = vmatprep.subr.mxu0 0.0
    %1407 = vmatpush1.msra.mxu0 0.0
    %1408 = vmatprep.subr.mxu0 0.0
    %1409 = vmatpush1.msra.mxu0 0.0
    %1410 = vmatprep.subr.mxu0 0.0
    %1411 = vmatpush1.msra.mxu0 0.0
    %1412 = vmatprep.subr.mxu0 0.0
    %1413 = vmatpush1.msra.mxu0 0.0
    %1414 = vmatprep.subr.mxu0 0.0
    %1415 = vmatpush1.msra.mxu0 0.0
    %1416 = vmatprep.subr.mxu0 0.0
    %1417 = vmatpush1.msra.mxu0 0.0
    %1418 = vmatprep.subr.mxu0 0.0
    %1419 = vmatpush1.msra.mxu0 0.0
    %1420 = vmatprep.subr.mxu0 0.0
    %1421 = vmatpush1.msra.mxu0 0.0
    %1422 = vmatprep.subr.mxu0 0.0
    %1423 = vmatpush1.msra.mxu0 0.0
    %1424 = vmatprep.subr.mxu0 0.0
    %1425 = vmatpush1.msra.mxu0 0.0
    %1426 = vmatprep.subr.mxu0 0.0
    %1427 = vmatpush1.msra.mxu0 0.0
    %1428 = vmatprep.subr.mxu0 0.0
    %1429 = vmatpush1.msra.mxu0 0.0
    %1430 = vmatprep.mubr.f32.mxu0 0.0
    %1431 = vmatmul.mubr.f32.gmra.mrb[0].mxu0 %v1345
    %v1432 = vpop.f32.mrb[0].mxu0
    %v1433 = vadd.f32 %v1365, %v1432
    %v1434 = vpop.f32.mrb[0].mxu0
    %1435 = vdwg.mxu0
    %v1436 = vld [vmem:[#allocation6 + $0x180] sm:$0xff]
    %v1437 = vld [vmem:[#allocation6 + $0x188] sm:$0xff]
    %v1438 = vld [vmem:[#allocation6 + $0x190] sm:$0xff]
    %v1439 = vld [vmem:[#allocation6 + $0x198] sm:$0xff]
    %v1440 = vld [vmem:[#allocation6 + $0x1a0] sm:$0xff]
    %v1441 = vld [vmem:[#allocation6 + $0x1a8] sm:$0xff]
    %v1442 = vld [vmem:[#allocation6 + $0x1b0] sm:$0xff]
    %v1443 = vld [vmem:[#allocation6 + $0x1b8] sm:$0xff]
    %v1444 = vld [vmem:[#allocation6 + $0x1c0] sm:$0xff]
    %v1445 = vld [vmem:[#allocation6 + $0x1c8] sm:$0xff]
    %v1446 = vld [vmem:[#allocation6 + $0x1d0] sm:$0xff]
    %v1447 = vld [vmem:[#allocation6 + $0x1d8] sm:$0xff]
    %v1448 = vld [vmem:[#allocation6 + $0x1e0] sm:$0xff]
    %v1449 = vld [vmem:[#allocation6 + $0x1e8] sm:$0xff]
    %v1450 = vld [vmem:[#allocation6 + $0x1f0] sm:$0xff]
    %v1451 = vld [vmem:[#allocation6 + $0x1f8] sm:$0xff]
    %v1452 = vlaneseq
    %v1453 = vshrl.u32 %v1452, 7
    %v1454 = vsub.s32 2, %v1453
    %v1455 = vrot.slane %v1335, %v1454
    %1456 = vmatprep.subr.mxu0 0.0
    %1457 = vmatpush1.msra.mxu0 %v1436
    %1458 = vmatprep.subr.mxu0 0.0
    %1459 = vmatpush1.msra.mxu0 %v1437
    %1460 = vmatprep.subr.mxu0 0.0
    %1461 = vmatpush1.msra.mxu0 %v1438
    %1462 = vmatprep.subr.mxu0 0.0
    %1463 = vmatpush1.msra.mxu0 %v1439
    %1464 = vmatprep.subr.mxu0 0.0
    %1465 = vmatpush1.msra.mxu0 %v1440
    %1466 = vmatprep.subr.mxu0 0.0
    %1467 = vmatpush1.msra.mxu0 %v1441
    %1468 = vmatprep.subr.mxu0 0.0
    %1469 = vmatpush1.msra.mxu0 %v1442
    %1470 = vmatprep.subr.mxu0 0.0
    %1471 = vmatpush1.msra.mxu0 %v1443
    %1472 = vmatprep.subr.mxu0 0.0
    %1473 = vmatpush1.msra.mxu0 %v1444
    %1474 = vmatprep.subr.mxu0 0.0
    %1475 = vmatpush1.msra.mxu0 %v1445
    %1476 = vmatprep.subr.mxu0 0.0
    %1477 = vmatpush1.msra.mxu0 %v1446
    %1478 = vmatprep.subr.mxu0 0.0
    %1479 = vmatpush1.msra.mxu0 %v1447
    %1480 = vmatprep.subr.mxu0 0.0
    %1481 = vmatpush1.msra.mxu0 %v1448
    %1482 = vmatprep.subr.mxu0 0.0
    %1483 = vmatpush1.msra.mxu0 %v1449
    %1484 = vmatprep.subr.mxu0 0.0
    %1485 = vmatpush1.msra.mxu0 %v1450
    %1486 = vmatprep.subr.mxu0 0.0
    %1487 = vmatpush1.msra.mxu0 %v1451
    %1488 = vmatprep.subr.mxu0 0.0
    %1489 = vmatpush1.msra.mxu0 0.0
    %1490 = vmatprep.subr.mxu0 0.0
    %1491 = vmatpush1.msra.mxu0 0.0
    %1492 = vmatprep.subr.mxu0 0.0
    %1493 = vmatpush1.msra.mxu0 0.0
    %1494 = vmatprep.subr.mxu0 0.0
    %1495 = vmatpush1.msra.mxu0 0.0
    %1496 = vmatprep.subr.mxu0 0.0
    %1497 = vmatpush1.msra.mxu0 0.0
    %1498 = vmatprep.subr.mxu0 0.0
    %1499 = vmatpush1.msra.mxu0 0.0
    %1500 = vmatprep.subr.mxu0 0.0
    %1501 = vmatpush1.msra.mxu0 0.0
    %1502 = vmatprep.subr.mxu0 0.0
    %1503 = vmatpush1.msra.mxu0 0.0
    %1504 = vmatprep.subr.mxu0 0.0
    %1505 = vmatpush1.msra.mxu0 0.0
    %1506 = vmatprep.subr.mxu0 0.0
    %1507 = vmatpush1.msra.mxu0 0.0
    %1508 = vmatprep.subr.mxu0 0.0
    %1509 = vmatpush1.msra.mxu0 0.0
    %1510 = vmatprep.subr.mxu0 0.0
    %1511 = vmatpush1.msra.mxu0 0.0
    %1512 = vmatprep.subr.mxu0 0.0
    %1513 = vmatpush1.msra.mxu0 0.0
    %1514 = vmatprep.subr.mxu0 0.0
    %1515 = vmatpush1.msra.mxu0 0.0
    %1516 = vmatprep.subr.mxu0 0.0
    %1517 = vmatpush1.msra.mxu0 0.0
    %1518 = vmatprep.subr.mxu0 0.0
    %1519 = vmatpush1.msra.mxu0 0.0
    %1520 = vmatprep.mubr.f32.mxu0 0.0
    %1521 = vmatmul.mubr.f32.gmra.mrb[0].mxu0 %v1433
    %v1522 = vpop.f32.mrb[0].mxu0
    %v1523 = vadd.f32 %v1455, %v1522
    %v1524 = vpop.f32.mrb[0].mxu0
    %1525 = vdwg.mxu0
    %v1526 = vand.u32 2147483647, %v1523
    %v1527 = vsub.f32 0.0, %v1526
    %v1528 = vmul.f32 %v1527, 1.442695
    %v1529 = vpow.pop %v1528
    %vm1530 = vcmp.ge.f32.partialorder %v1523, 0.0
    %v1531 = vadd.f32 %v1529, 1.0
    %v1532 = vrcp.pop %v1531
    %v1533 = vmul.f32 1.0, %v1532
    %v1534 = vmul.f32 %v1529, %v1532
    %v1535 = vsel %vm1530, %v1533, %v1534
    %vm1536 = vcmask 9216
    %1537 = vst.msk [vmem:[#allocation8] sm:$0x3] %vm1536, %v1535
    // Predicated region
    $region26: #{tpu_custom_call.1} parent=1 // pred_check
      _
    $region27: #{tpu_custom_call.1} parent=1 // pred_check_branch
      %1539 = sbr.rel (0) target = $region29
    $region28: #{tpu_custom_call.1} parent=1 // pred_region
      %s1541 = ssub.s32 32, 32
      %1542 = vsyncadd [#allocation5], %s1541
      %s1544 = sshll.u32 [#allocation8], 4
      %s1545 = int_to_ptr.vmem [resolvable:$true] %s1544
      %1547 = dma.vmem_to_hbm [thread:$0]  %s1545, 32, %s4, [#allocation5]
    $region29: #{tpu_custom_call.1} parent=1 // pred_fallthru
      _
    // Predicated region
    $region30: #{tpu_custom_call.1} parent=1 // pred_check
      _
    $region31: #{tpu_custom_call.1} parent=1 // pred_check_branch
      %1549 = sbr.rel (0) target = $region33
    $region32: #{tpu_custom_call.1} parent=1 // pred_region
      %1550 = dma.done [#allocation5], 32
    $region33: #{tpu_custom_call.1} parent=1 // pred_fallthru
      _
    %1551 = vsyncpa [#allocation4], 1
    %1552 = vsyncpa [#allocation7], 1
    %1553 = vsyncpa [#allocation5], 1

</llo_original>
